<compile_context>
chip_gen: v7x
topology: tpu7x:2x2x1
jax: 0.10.0
libtpu: 0.0.40
codegen_flags: <defaults>
</compile_context>

<pallas_src>
import functools

import jax
import jax.numpy as jnp
from jax.experimental import pallas as pl
from jax.experimental.pallas import tpu as pltpu

_HIGHEST = jax.lax.Precision.HIGHEST


def _round_up(a, b):
    return (a + b - 1) // b * b


def _cdiv(a, b):
    return (a + b - 1) // b


def _vmem_capacity_bytes():
    """Per-core VMEM capacity; conservative 64 MiB (v7x) fallback if the query fails."""
    try:
        return int(pltpu.get_tpu_info().vmem_capacity_bytes)
    except Exception:
        return 64 << 20


def _padded_tile_bytes(rows, cols, itemsize):
    """Bytes of a 2-D array once padded to (8,128) VMEM tiles."""
    return _round_up(max(rows, 1), 8) * _round_up(max(cols, 1), 128) * itemsize


# -----------------------------------------------------------------------------
# Fused single-pass kernel: pool + squeeze/excite + scale in one HBM pass.
# -----------------------------------------------------------------------------
def _ca_fused_kernel(x_ref, w1_ref, b1_ref, w2_ref, b2_ref, o_ref, *, inv_s):
    # x_ref: (nb, C, S) native dtype; trailing dims are the FULL array extents, so no
    # explicit tail masking is needed here.
    xv = x_ref[...]

    # Global average pool over the spatial lanes.
    if xv.dtype == jnp.float32:
        pooled = jnp.sum(xv, axis=-1)                      # exact f32 lane reduce
    else:
        # TODO(synk): chunked native-dtype accumulation would avoid this upcast for bf16.
        pooled = jnp.sum(xv.astype(jnp.float32), axis=-1)
    pooled = pooled * inv_s                                # (nb, C) f32

    # Squeeze / excite: tiny batched matmuls (no block-diagonal kron weights).
    h = jnp.dot(pooled, w1_ref[...], precision=_HIGHEST,
                preferred_element_type=jnp.float32) + b1_ref[...]      # (nb, Cr)
    h = jnp.maximum(h, 0.0)
    sc = jnp.dot(h, w2_ref[...], precision=_HIGHEST,
                 preferred_element_type=jnp.float32) + b2_ref[...]     # (nb, C)
    sc = jax.nn.sigmoid(sc)

    # Per-channel scale, broadcast across the lane-dense spatial axis, in native dtype.
    o_ref[...] = xv * sc[:, :, None].astype(xv.dtype)


def _ca_fused(x3, w1, b1, w2, b2, *, n, c, s, cr, nb, vmem_limit):
    esize = x3.dtype.itemsize
    grid = (_cdiv(n, nb),)

    f32 = jnp.float32
    w1f = w1.astype(f32)                                   # (c, cr)
    w2f = w2.astype(f32)                                   # (cr, c)
    b1r = b1.astype(f32).reshape(1, cr)
    b2r = b2.astype(f32).reshape(1, c)

    cost = pl.CostEstimate(
        flops=int(2 * n * c * s + 4 * n * c * cr),
        transcendentals=int(n * c),
        bytes_accessed=int(2 * n * c * s * esize),
    )

    kernel = functools.partial(_ca_fused_kernel, inv_s=1.0 / float(s))

    return pl.pallas_call(
        kernel,
        out_shape=jax.ShapeDtypeStruct((n, c, s), x3.dtype),
        grid_spec=pltpu.PrefetchScalarGridSpec(
            num_scalar_prefetch=0,
            grid=grid,
            in_specs=[
                pl.BlockSpec((nb, c, s), lambda i: (i, 0, 0)),
                pl.BlockSpec((c, cr), lambda i: (0, 0)),
                pl.BlockSpec((1, cr), lambda i: (0, 0)),
                pl.BlockSpec((cr, c), lambda i: (0, 0)),
                pl.BlockSpec((1, c), lambda i: (0, 0)),
            ],
            out_specs=pl.BlockSpec((nb, c, s), lambda i: (i, 0, 0)),
        ),
        compiler_params=pltpu.CompilerParams(
            dimension_semantics=("parallel",),
            vmem_limit_bytes=int(vmem_limit),
        ),
        cost_estimate=cost,
    )(x3, w1f, b1r, w2f, b2r)


# -----------------------------------------------------------------------------
# Two-pass fallback for very large D*H*W (keeps per-step VMEM bounded).
# -----------------------------------------------------------------------------
def _pool_sum_kernel(x_ref, sum_ref, *, ts, s):
    j = pl.program_id(1)
    xv = x_ref[...]                                        # (1, C, ts) native dtype

    if s % ts != 0:
        # Ragged last spatial tile: OOB lanes hold garbage -> mask before the reduce.
        lane = jax.lax.broadcasted_iota(jnp.int32, xv.shape, 2)
        valid = (j * ts + lane) < s
        xv = jnp.where(valid, xv, jnp.zeros_like(xv))

    part = jnp.sum(xv.astype(jnp.float32), axis=-1, keepdims=True)     # (1, C, 1)

    @pl.when(j == 0)
    def _():
        sum_ref[...] = jnp.zeros_like(sum_ref)

    sum_ref[...] += part


def _scale_kernel(x_ref, s_ref, o_ref):
    # Native-dtype multiply; OOB lanes of the last spatial tile are dropped on store.
    o_ref[...] = x_ref[...] * s_ref[...].astype(x_ref.dtype)


def _ca_two_pass(x3, w1, b1, w2, b2, *, n, c, s, cr, max_tile_bytes, vmem_cap):
    esize = x3.dtype.itemsize

    lane_budget = max(128, (max_tile_bytes // (c * esize)) // 128 * 128)
    ts = s if s <= lane_budget else lane_budget
    grid_s = _cdiv(s, ts)

    tile_bytes = c * ts * esize
    cast_temp = 0 if x3.dtype == jnp.float32 else c * ts * 4
    vmem_limit = 4 * tile_bytes + cast_temp + (4 << 20)
    vmem_limit = int(min(max(vmem_limit, 32 << 20), int(0.8 * vmem_cap)))

    # Pass 1: per-(sample, channel) spatial sums, accumulated across spatial tiles.
    sums = pl.pallas_call(
        functools.partial(_pool_sum_kernel, ts=ts, s=s),
        out_shape=jax.ShapeDtypeStruct((n, c, 1), jnp.float32),
        grid_spec=pltpu.PrefetchScalarGridSpec(
            num_scalar_prefetch=0,
            grid=(n, grid_s),
            in_specs=[pl.BlockSpec((1, c, ts), lambda i, j: (i, 0, j))],
            out_specs=pl.BlockSpec((1, c, 1), lambda i, j: (i, 0, 0)),
        ),
        compiler_params=pltpu.CompilerParams(
            dimension_semantics=("parallel", "arbitrary"),
            vmem_limit_bytes=vmem_limit,
        ),
        cost_estimate=pl.CostEstimate(
            flops=int(n * c * s), transcendentals=0,
            bytes_accessed=int(n * c * s * esize + n * c * 4)),
    )(x3)

    # Tiny squeeze/excite on (N, C): negligible work -> plain XLA (matches reference).
    pooled = sums[..., 0] * (1.0 / float(s))                               # (n, c)
    h = jnp.maximum(jnp.dot(pooled, w1.astype(jnp.float32),
                            precision=_HIGHEST) + b1, 0.0)
    scl = jax.nn.sigmoid(jnp.dot(h, w2.astype(jnp.float32),
                                 precision=_HIGHEST) + b2)                 # (n, c)
    scl3 = scl.astype(jnp.float32).reshape(n, c, 1)

    # Pass 2: apply the per-channel scale, tiled over the spatial axis.
    return pl.pallas_call(
        _scale_kernel,
        out_shape=jax.ShapeDtypeStruct((n, c, s), x3.dtype),
        grid_spec=pltpu.PrefetchScalarGridSpec(
            num_scalar_prefetch=0,
            grid=(n, grid_s),
            in_specs=[pl.BlockSpec((1, c, ts), lambda i, j: (i, 0, j)),
                      pl.BlockSpec((1, c, 1), lambda i, j: (i, 0, 0))],
            out_specs=pl.BlockSpec((1, c, ts), lambda i, j: (i, 0, j)),
        ),
        compiler_params=pltpu.CompilerParams(
            dimension_semantics=("parallel", "parallel"),
            vmem_limit_bytes=vmem_limit,
        ),
        cost_estimate=pl.CostEstimate(
            flops=int(n * c * s), transcendentals=0,
            bytes_accessed=int(2 * n * c * s * esize)),
    )(x3, scl3)


# -----------------------------------------------------------------------------
# Public wrapper.
# -----------------------------------------------------------------------------
def ca_layer2(x, w1, b1, w2, b2, *, force_two_pass=False, max_tile_bytes=None):
    """CALayer2 forward. x: (N, C, D, H, W); w1: (C, Cr); b1: (Cr,); w2: (Cr, C); b2: (C,)."""
    n, c, d, h, w = x.shape
    s = d * h * w
    cr = w1.shape[1]
    esize = x.dtype.itemsize

    # Free reshape; no padding / slicing HBM passes around the kernel.
    x3 = x.reshape(n, c, s)

    vmem_cap = _vmem_capacity_bytes()

    # Tiny resident weight slabs (padded to VMEM tiles, double-buffered by default).
    weight_vmem = 2 * (_padded_tile_bytes(c, cr, 4) + _padded_tile_bytes(cr, c, 4)
                       + _padded_tile_bytes(1, cr, 4) + _padded_tile_bytes(1, c, 4))

    budget = int(0.6 * vmem_cap) - weight_vmem - (4 << 20)

    per_sample_hbm = c * s * esize
    cast_temp = 0 if x.dtype == jnp.float32 else c * s * 4     # f32 temp for sub-f32 pool
    need_per_sample = 4 * per_sample_hbm + cast_temp           # 2x in + 2x out (+ temp)

    nb_max = budget // max(1, need_per_sample)

    if force_two_pass or nb_max < 1:
        if max_tile_bytes is None:
            max_tile_bytes = max(c * 128 * esize, budget // 5)
        out3 = _ca_two_pass(x3, w1, b1, w2, b2, n=n, c=c, s=s, cr=cr,
                            max_tile_bytes=max_tile_bytes, vmem_cap=vmem_cap)
    else:
        nb = int(min(n, nb_max))
        # Only enforce >=2 grid steps on small-VMEM multi-TensorCore parts (v7x);
        # single-TC v5e/v6e take the biggest block that fits (fewer per-step overheads).
        if vmem_cap < (100 << 20) and n >= 2:
            nb = min(nb, _cdiv(n, 2))
        nb = max(1, nb)
        block_bytes = nb * per_sample_hbm
        vmem_limit = 4 * block_bytes + nb * cast_temp + weight_vmem + (4 << 20)
        vmem_limit = int(min(max(vmem_limit, 32 << 20), int(0.85 * vmem_cap)))
        out3 = _ca_fused(x3, w1, b1, w2, b2, n=n, c=c, s=s, cr=cr,
                         nb=nb, vmem_limit=vmem_limit)

    return out3.reshape(n, c, d, h, w)


def _reference(x, w1, b1, w2, b2):
    # Pure-JAX reference of the PyTorch forward.
    y = jnp.mean(x, axis=(2, 3, 4))                                       # (N, C)
    h = jnp.maximum(jnp.dot(y, w1, precision=_HIGHEST) + b1, 0.0)         # (N, Cr)
    s = jax.nn.sigmoid(jnp.dot(h, w2, precision=_HIGHEST) + b2)           # (N, C)
    return x * s[:, :, None, None, None]


if __name__ == "__main__":
    key = jax.random.PRNGKey(0)
    N, C, D, H, W = 4, 32, 3, 8, 10          # S = 240: non-128-multiple spatial extent
    reduction = 16
    Cr = C // reduction

    k_x, k_w1, k_b1, k_w2, k_b2 = jax.random.split(key, 5)
    x = jax.random.normal(k_x, (N, C, D, H, W), dtype=jnp.float32)

    # Conv2d(C, Cr, 1) weight is (Cr, C, 1, 1); stored transposed as (C, Cr) so
    # y @ W1 == conv1x1(y); likewise w2 is (Cr, C).
    w1 = jax.random.normal(k_w1, (C, Cr), dtype=jnp.float32) * 0.1
    b1 = jax.random.normal(k_b1, (Cr,), dtype=jnp.float32) * 0.1
    w2 = jax.random.normal(k_w2, (Cr, C), dtype=jnp.float32) * 0.1
    b2 = jax.random.normal(k_b2, (C,), dtype=jnp.float32) * 0.1

    ref = _reference(x, w1, b1, w2, b2)

    out = jax.block_until_ready(ca_layer2(x, w1, b1, w2, b2))
    assert out.shape == x.shape
    assert jnp.allclose(out, ref, atol=2e-5, rtol=2e-5), "fused kernel mismatch vs reference"

    # Two-pass fallback with a small spatial tile so the ragged 240-lane tail exercises
    # the in-kernel lane mask and the cross-tile accumulator.
    out2 = jax.block_until_ready(
        ca_layer2(x, w1, b1, w2, b2, force_two_pass=True, max_tile_bytes=16 * 1024))
    assert jnp.allclose(out2, ref, atol=2e-5, rtol=2e-5), "two-pass kernel mismatch vs reference"

    print("KERNEL_OK")
</pallas_src>

<mosaic_0001>
module attributes {stable_mosaic.version = 11 : i64} {
  func.func @_ca_fused_kernel(%arg0: i32, %arg1: memref<2x32x240xf32, #tpu.memory_space<vmem>>, %arg2: memref<32x2xf32, #tpu.memory_space<vmem>>, %arg3: memref<1x2xf32, #tpu.memory_space<vmem>>, %arg4: memref<2x32xf32, #tpu.memory_space<vmem>>, %arg5: memref<1x32xf32, #tpu.memory_space<vmem>>, %arg6: memref<2x32x240xf32, #tpu.memory_space<vmem>>) attributes {dimension_semantics = [#tpu.dimension_semantics<parallel>], iteration_bounds = array<i64: 2>, scalar_prefetch = 0 : i64, scratch_operands = 0 : i64, tpu.core_type = #tpu.core_type<tc>, window_params = [{transform_indices = @transform_0, window_bounds = array<i64: 2, 32, 240>}, {pipeline_mode = #tpu.pipeline_mode<synchronous>, transform_indices = @transform_1, window_bounds = array<i64: 32, 2>}, {pipeline_mode = #tpu.pipeline_mode<synchronous>, transform_indices = @transform_2, window_bounds = array<i64: 1, 2>}, {pipeline_mode = #tpu.pipeline_mode<synchronous>, transform_indices = @transform_3, window_bounds = array<i64: 2, 32>}, {pipeline_mode = #tpu.pipeline_mode<synchronous>, transform_indices = @transform_4, window_bounds = array<i64: 1, 32>}, {transform_indices = @transform_5, window_bounds = array<i64: 2, 32, 240>}]} {
    %c0 = arith.constant 0 : index
    %c0_0 = arith.constant 0 : index
    %c0_1 = arith.constant 0 : index
    %0 = vector.load %arg1[%c0, %c0_0, %c0_1] : memref<2x32x240xf32, #tpu.memory_space<vmem>>, vector<2x32x240xf32>
    %cst = arith.constant dense<0.000000e+00> : vector<2x32xf32>
    %1 = vector.multi_reduction <add>, %0, %cst [2] : vector<2x32x240xf32> to vector<2x32xf32>
    %cst_2 = arith.constant 0.00416666688 : f32
    %2 = vector.broadcast %cst_2 : f32 to vector<2x32xf32>
    %3 = arith.mulf %1, %2 : vector<2x32xf32>
    %c0_3 = arith.constant 0 : index
    %c0_4 = arith.constant 0 : index
    %4 = vector.load %arg2[%c0_3, %c0_4] : memref<32x2xf32, #tpu.memory_space<vmem>>, vector<32x2xf32>
    %cst_5 = arith.constant dense<0.000000e+00> : vector<2x2xf32>
    %5 = tpu.matmul %3, %4, %cst_5 {dimension_numbers = #tpu.dot_dimension_numbers<[1], [0], [0], [1], [0, 0, 1, 1], [], []>, precision = #tpu.contract_precision<fp32>} : vector<2x32xf32>, vector<32x2xf32>, vector<2x2xf32> -> vector<2x2xf32>
    %c0_6 = arith.constant 0 : index
    %c0_7 = arith.constant 0 : index
    %6 = vector.load %arg3[%c0_6, %c0_7] : memref<1x2xf32, #tpu.memory_space<vmem>>, vector<1x2xf32>
    %7 = vector.broadcast %6 : vector<1x2xf32> to vector<2x2xf32>
    %8 = arith.addf %5, %7 : vector<2x2xf32>
    %cst_8 = arith.constant 0.000000e+00 : f32
    %9 = vector.broadcast %cst_8 : f32 to vector<2x2xf32>
    %10 = arith.maximumf %8, %9 : vector<2x2xf32>
    %c0_9 = arith.constant 0 : index
    %c0_10 = arith.constant 0 : index
    %11 = vector.load %arg4[%c0_9, %c0_10] : memref<2x32xf32, #tpu.memory_space<vmem>>, vector<2x32xf32>
    %cst_11 = arith.constant dense<0.000000e+00> : vector<2x32xf32>
    %12 = tpu.matmul %10, %11, %cst_11 {dimension_numbers = #tpu.dot_dimension_numbers<[1], [0], [0], [1], [0, 0, 1, 1], [], []>, precision = #tpu.contract_precision<fp32>} : vector<2x2xf32>, vector<2x32xf32>, vector<2x32xf32> -> vector<2x32xf32>
    %c0_12 = arith.constant 0 : index
    %c0_13 = arith.constant 0 : index
    %13 = vector.load %arg5[%c0_12, %c0_13] : memref<1x32xf32, #tpu.memory_space<vmem>>, vector<1x32xf32>
    %14 = vector.broadcast %13 : vector<1x32xf32> to vector<2x32xf32>
    %15 = arith.addf %12, %14 : vector<2x32xf32>
    %16 = arith.negf %15 : vector<2x32xf32>
    %17 = math.exp %16 : vector<2x32xf32>
    %cst_14 = arith.constant 1.000000e+00 : f32
    %18 = vector.broadcast %cst_14 : f32 to vector<2x32xf32>
    %19 = arith.addf %18, %17 : vector<2x32xf32>
    %20 = arith.divf %18, %19 : vector<2x32xf32>
    %21 = vector.shape_cast %20 : vector<2x32xf32> to vector<2x32x1xf32>
    %22 = vector.broadcast %21 : vector<2x32x1xf32> to vector<2x32x240xf32>
    %23 = arith.mulf %0, %22 : vector<2x32x240xf32>
    %c0_15 = arith.constant 0 : index
    %c0_16 = arith.constant 0 : index
    %c0_17 = arith.constant 0 : index
    %24 = vector.load %arg6[%c0_15, %c0_16, %c0_17] : memref<2x32x240xf32, #tpu.memory_space<vmem>>, vector<2x32x240xf32>
    tpu.vector_store %arg6[%c0_15, %c0_16, %c0_17], %23 {strides = array<i32>} : memref<2x32x240xf32, #tpu.memory_space<vmem>>, vector<2x32x240xf32>,
    return
  }
  func.func @transform_0(%arg0: i32) -> (i32, i32, i32) {
    %c0_i32 = arith.constant 0 : i32
    %c0_i32_0 = arith.constant 0 : i32
    %c0_i32_1 = arith.constant 0 : i32
    return %arg0, %c0_i32, %c0_i32_0 : i32, i32, i32
  }
  func.func @transform_1(%arg0: i32) -> (i32, i32) {
    %c0_i32 = arith.constant 0 : i32
    %c0_i32_0 = arith.constant 0 : i32
    %c0_i32_1 = arith.constant 0 : i32
    return %c0_i32, %c0_i32_0 : i32, i32
  }
  func.func @transform_2(%arg0: i32) -> (i32, i32) {
    %c0_i32 = arith.constant 0 : i32
    %c0_i32_0 = arith.constant 0 : i32
    %c0_i32_1 = arith.constant 0 : i32
    return %c0_i32, %c0_i32_0 : i32, i32
  }
  func.func @transform_3(%arg0: i32) -> (i32, i32) {
    %c0_i32 = arith.constant 0 : i32
    %c0_i32_0 = arith.constant 0 : i32
    %c0_i32_1 = arith.constant 0 : i32
    return %c0_i32, %c0_i32_0 : i32, i32
  }
  func.func @transform_4(%arg0: i32) -> (i32, i32) {
    %c0_i32 = arith.constant 0 : i32
    %c0_i32_0 = arith.constant 0 : i32
    %c0_i32_1 = arith.constant 0 : i32
    return %c0_i32, %c0_i32_0 : i32, i32
  }
  func.func @transform_5(%arg0: i32) -> (i32, i32, i32) {
    %c0_i32 = arith.constant 0 : i32
    %c0_i32_0 = arith.constant 0 : i32
    %c0_i32_1 = arith.constant 0 : i32
    return %arg0, %c0_i32, %c0_i32_0 : i32, i32, i32
  }
}

</mosaic_0001>

<llo_original>
// kernel: tpu_custom_call.1
$region0: #{tpu_custom_call.1}
  #allocation0 [shape = 'u32[]', space=smem, size = 0x4, offset = 0x4, fixed_abs, tag = 'smem constant byte address 0x4 - core index']
  #allocation1 [shape = 'u32[144,128]{1,0:T(1,128)}', space=vmem, size = 0x12000, scoped, tag = 'internal scratch']
  %s0 = inlined_call_operand.hbm [shape: f32[4,32,240], index: 0, kind: input, shape index: {}]
  %s1 = inlined_call_operand.vmem [shape: f32[32,2], index: 1, kind: input, shape index: {}]
  %s2 = inlined_call_operand.vmem [shape: f32[1,2], index: 2, kind: input, shape index: {}]
  %s3 = inlined_call_operand.vmem [shape: f32[2,32], index: 3, kind: input, shape index: {}]
  %s4 = inlined_call_operand.vmem [shape: f32[1,32], index: 4, kind: input, shape index: {}]
  %s5 = inlined_call_operand.hbm [shape: f32[4,32,240], index: 5, kind: output, shape index: {}]
  %s6 = sld [smem:[#allocation0]]
  $region57: #{tpu_custom_call.1} parent=0
    _
  %s8 = ssub.s32 1, %s6
  %s9 = scalar_select 0, %s8, %s6
  $region1: #{tpu_custom_call.1} parent=0
    #allocation2 [shape = 'u8[131072]{0}', space=vmem, size = 0x20000, scoped, tag = 'input window, operand 0']
    #allocation3 [shape = 's32[2]{0}', space=sflag, size = 0x8, scoped, tag = 'scoped memory for tpu_custom_call.1']
    #allocation4 [shape = 's32[2]{0}', space=sflag, size = 0x8, scoped, tag = 'scoped memory for tpu_custom_call.1']
    #allocation5 [shape = 'u8[131072]{0}', space=vmem, size = 0x20000, scoped, tag = 'output window, operand 0']
    %10 = vsyncpa [#allocation3], 0
    %s11 = scalar_lea.sflag [#allocation3], 1
    %12 = vsyncpa %s11, 0
    %13 = vsyncpa [#allocation4], 0
    %s14 = scalar_lea.sflag [#allocation4], 1
    %15 = vsyncpa %s14, 0
    loop: start=0, step=1, limit=4
    $region2: #{tpu_custom_call.1} parent=1 // loop_pre_header
      _
    $region3: #{tpu_custom_call.1} parent=1 // loop_header
      %s17 = sphi 0, %s21
      %p18 = scmp.ge.s32.totalorder %s17, 4
      %s27 = sphi 0, %s29
      %s30 = sphi 0, %s27
      %s31 = sphi 0, %s30
      %s47 = sphi 0, %s31
      %s51 = sphi 0, %s51
      %s53 = sphi 0, %s51
      %s54 = sphi 0, %s53
      %s68 = sphi 0, %s54
      %s72 = sphi 0, %s72
      %s74 = sphi 0, %s72
      %s75 = sphi 0, %s74
      %s89 = sphi 0, %s75
      %s93 = sphi 0, %s93
      %s95 = sphi 0, %s93
      %s96 = sphi 0, %s95
      %s110 = sphi 0, %s96
      %s114 = sphi 0, %s114
      %s116 = sphi 0, %s114
      %s117 = sphi 0, %s116
      %s131 = sphi 0, %s117
      %s137 = sphi 0, %s139
      %s140 = sphi 0, %s137
      %s141 = sphi 0, %s140
      %s157 = sphi 0, %s141
    $region4: #{tpu_custom_call.1} parent=1 // loop_header_branch
      %20 = sbr.rel (%p18) target = $region8
    $region5: #{tpu_custom_call.1} parent=1 // loop_body
      %s22 = ssub.s32 %s17, 1
      %s23 = ssub.s32 %s17, 2
      %s24 = sadd.s32 %s17, 1
      %s25 = ssub.s32 %s17, %s24
      %p26 = scmp.eq.s32.totalorder %s25, 0
      %s28 = sadd.s32 %s27, 1
      %s29 = scalar_select %p26, %s27, %s28
      %p32 = pneg %p26
      %p33 = scmp.eq.s32.totalorder %s17, 1
      %p34 = por %p32, %p33
      %p35 = scmp.ne.s32.totalorder %s27, %s30
      %p36 = scmp.eq.s32.totalorder %s17, 0
      %p37 = por %p35, %p36
      %p38 = scmp.ne.s32.totalorder %s27, %s30
      %p39 = scmp.eq.s32.totalorder %s22, 1
      %p40 = por %p38, %p39
      %p41 = scmp.ne.s32.totalorder %s30, %s31
      %p42 = scmp.eq.s32.totalorder %s22, 0
      %p43 = por %p41, %p42
      %p44 = scmp.ne.s32.totalorder %s30, %s31
      %p45 = scmp.eq.s32.totalorder %s23, 1
      %p46 = por %p44, %p45
      %p48 = scmp.ne.s32.totalorder %s31, %s47
      %p49 = scmp.eq.s32.totalorder %s23, 0
      %p50 = por %p48, %p49
      %s52 = sadd.s32 %s51, 1
      %p55 = scmp.eq.s32.totalorder %s17, 1
      %p56 = scmp.ne.s32.totalorder %s51, %s53
      %p57 = scmp.eq.s32.totalorder %s17, 0
      %p58 = por %p56, %p57
      %p59 = scmp.ne.s32.totalorder %s51, %s53
      %p60 = scmp.eq.s32.totalorder %s22, 1
      %p61 = por %p59, %p60
      %p62 = scmp.ne.s32.totalorder %s53, %s54
      %p63 = scmp.eq.s32.totalorder %s22, 0
      %p64 = por %p62, %p63
      %p65 = scmp.ne.s32.totalorder %s53, %s54
      %p66 = scmp.eq.s32.totalorder %s23, 1
      %p67 = por %p65, %p66
      %p69 = scmp.ne.s32.totalorder %s54, %s68
      %p70 = scmp.eq.s32.totalorder %s23, 0
      %p71 = por %p69, %p70
      %s73 = sadd.s32 %s72, 1
      %p76 = scmp.eq.s32.totalorder %s17, 1
      %p77 = scmp.ne.s32.totalorder %s72, %s74
      %p78 = scmp.eq.s32.totalorder %s17, 0
      %p79 = por %p77, %p78
      %p80 = scmp.ne.s32.totalorder %s72, %s74
      %p81 = scmp.eq.s32.totalorder %s22, 1
      %p82 = por %p80, %p81
      %p83 = scmp.ne.s32.totalorder %s74, %s75
      %p84 = scmp.eq.s32.totalorder %s22, 0
      %p85 = por %p83, %p84
      %p86 = scmp.ne.s32.totalorder %s74, %s75
      %p87 = scmp.eq.s32.totalorder %s23, 1
      %p88 = por %p86, %p87
      %p90 = scmp.ne.s32.totalorder %s75, %s89
      %p91 = scmp.eq.s32.totalorder %s23, 0
      %p92 = por %p90, %p91
      %s94 = sadd.s32 %s93, 1
      %p97 = scmp.eq.s32.totalorder %s17, 1
      %p98 = scmp.ne.s32.totalorder %s93, %s95
      %p99 = scmp.eq.s32.totalorder %s17, 0
      %p100 = por %p98, %p99
      %p101 = scmp.ne.s32.totalorder %s93, %s95
      %p102 = scmp.eq.s32.totalorder %s22, 1
      %p103 = por %p101, %p102
      %p104 = scmp.ne.s32.totalorder %s95, %s96
      %p105 = scmp.eq.s32.totalorder %s22, 0
      %p106 = por %p104, %p105
      %p107 = scmp.ne.s32.totalorder %s95, %s96
      %p108 = scmp.eq.s32.totalorder %s23, 1
      %p109 = por %p107, %p108
      %p111 = scmp.ne.s32.totalorder %s96, %s110
      %p112 = scmp.eq.s32.totalorder %s23, 0
      %p113 = por %p111, %p112
      %s115 = sadd.s32 %s114, 1
      %p118 = scmp.eq.s32.totalorder %s17, 1
      %p119 = scmp.ne.s32.totalorder %s114, %s116
      %p120 = scmp.eq.s32.totalorder %s17, 0
      %p121 = por %p119, %p120
      %p122 = scmp.ne.s32.totalorder %s114, %s116
      %p123 = scmp.eq.s32.totalorder %s22, 1
      %p124 = por %p122, %p123
      %p125 = scmp.ne.s32.totalorder %s116, %s117
      %p126 = scmp.eq.s32.totalorder %s22, 0
      %p127 = por %p125, %p126
      %p128 = scmp.ne.s32.totalorder %s116, %s117
      %p129 = scmp.eq.s32.totalorder %s23, 1
      %p130 = por %p128, %p129
      %p132 = scmp.ne.s32.totalorder %s117, %s131
      %p133 = scmp.eq.s32.totalorder %s23, 0
      %p134 = por %p132, %p133
      %s135 = ssub.s32 %s17, %s24
      %p136 = scmp.eq.s32.totalorder %s135, 0
      %s138 = sadd.s32 %s137, 1
      %s139 = scalar_select %p136, %s137, %s138
      %p142 = pneg %p136
      %p143 = scmp.eq.s32.totalorder %s17, 1
      %p144 = por %p142, %p143
      %p145 = scmp.ne.s32.totalorder %s137, %s140
      %p146 = scmp.eq.s32.totalorder %s17, 0
      %p147 = por %p145, %p146
      %p148 = scmp.ne.s32.totalorder %s137, %s140
      %p149 = scmp.eq.s32.totalorder %s22, 1
      %p150 = por %p148, %p149
      %p151 = scmp.ne.s32.totalorder %s140, %s141
      %p152 = scmp.eq.s32.totalorder %s22, 0
      %p153 = por %p151, %p152
      %p154 = scmp.ne.s32.totalorder %s140, %s141
      %p155 = scmp.eq.s32.totalorder %s23, 1
      %p156 = por %p154, %p155
      %p158 = scmp.ne.s32.totalorder %s141, %s157
      %p159 = scmp.eq.s32.totalorder %s23, 0
      %p160 = por %p158, %p159
      %p161 = scmp.le.s32.totalorder 1, %s17
      %p162 = scmp.lt.s32.totalorder %s17, 3
      %p163 = pnand %p161, %p162
      %p164 = pneg %p163
      // Predicated region
      $region9: #{tpu_custom_call.1} parent=5 // pred_check
        _
      $region10: #{tpu_custom_call.1} parent=5 // pred_check_branch
        %166 = sbr.rel (%p163) target = $region12
      $region11: #{tpu_custom_call.1} parent=5 // pred_region
        %s167 = ssub.s32 %s17, 1
        // Predicated region
        $region13: #{tpu_custom_call.1} parent=11 // pred_check
          %p168 = pneg %p64
        $region14: #{tpu_custom_call.1} parent=11 // pred_check_branch
          %170 = sbr.rel (%p168) target = $region16
        $region15: #{tpu_custom_call.1} parent=11 // pred_region
          _
        $region16: #{tpu_custom_call.1} parent=11 // pred_fallthru
          _
        // Predicated region
        $region17: #{tpu_custom_call.1} parent=11 // pred_check
          %p171 = pneg %p85
        $region18: #{tpu_custom_call.1} parent=11 // pred_check_branch
          %173 = sbr.rel (%p171) target = $region20
        $region19: #{tpu_custom_call.1} parent=11 // pred_region
          _
        $region20: #{tpu_custom_call.1} parent=11 // pred_fallthru
          _
        // Predicated region
        $region21: #{tpu_custom_call.1} parent=11 // pred_check
          %p174 = pneg %p106
        $region22: #{tpu_custom_call.1} parent=11 // pred_check_branch
          %176 = sbr.rel (%p174) target = $region24
        $region23: #{tpu_custom_call.1} parent=11 // pred_region
          _
        $region24: #{tpu_custom_call.1} parent=11 // pred_fallthru
          _
        // Predicated region
        $region25: #{tpu_custom_call.1} parent=11 // pred_check
          %p177 = pneg %p127
        $region26: #{tpu_custom_call.1} parent=11 // pred_check_branch
          %179 = sbr.rel (%p177) target = $region28
        $region27: #{tpu_custom_call.1} parent=11 // pred_region
          _
        $region28: #{tpu_custom_call.1} parent=11 // pred_fallthru
          _
      $region12: #{tpu_custom_call.1} parent=5 // pred_fallthru
        _
      %p180 = scmp.lt.s32.totalorder %s17, 2
      // Predicated region
      $region29: #{tpu_custom_call.1} parent=5 // pred_check
        %p181 = pneg %p180
      $region30: #{tpu_custom_call.1} parent=5 // pred_check_branch
        %183 = sbr.rel (%p181) target = $region32
      $region31: #{tpu_custom_call.1} parent=5 // pred_region
        // Predicated region
        $region33: #{tpu_custom_call.1} parent=31 // pred_check
          %p184 = pneg %p37
        $region34: #{tpu_custom_call.1} parent=31 // pred_check_branch
          %186 = sbr.rel (%p184) target = $region36
        $region35: #{tpu_custom_call.1} parent=31 // pred_region
          %s187 = sand.u32 %s27, 1
          %s188 = scalar_lea.sflag [#allocation3], %s187
          %s189 = sand.u32 %s27, 1
          %s190 = smul.addr %s189, 128
          %s191 = scalar_lea.vmem [#allocation2], %s190
          %s192 = smul.u32 2, %s17
          %s194 = ssub.s32 2048, 2048
          %195 = vsyncadd %s188, %s194
          %s196 = smul.addr %s192, 8
          %s197 = smul.addr %s196, 128
          %s198 = scalar_lea.hbm %s0, %s197
          %s199 = sshll.u32 %s191, 4
          %s200 = int_to_ptr.vmem [resolvable:$true] %s199
          %205 = dma.hbm_to_vmem [thread:$0]  %s198, 2048, %s200, %s188, 256, 256, 16
        $region36: #{tpu_custom_call.1} parent=31 // pred_fallthru
          _
      $region32: #{tpu_custom_call.1} parent=5 // pred_fallthru
        _
      %p206 = scmp.le.s32.totalorder 1, %s17
      %p207 = scmp.lt.s32.totalorder %s17, 3
      %p208 = pnand %p206, %p207
      %p209 = pneg %p208
      // Predicated region
      $region37: #{tpu_custom_call.1} parent=5 // pred_check
        _
      $region38: #{tpu_custom_call.1} parent=5 // pred_check_branch
        %211 = sbr.rel (%p208) target = $region40
      $region39: #{tpu_custom_call.1} parent=5 // pred_region
        %s212 = ssub.s32 %s17, 1
        %s213 = sand.u32 %s30, 1
        %s214 = scalar_lea.sflag [#allocation3], %s213
        %s215 = sand.u32 %s30, 1
        %s216 = smul.addr %s215, 128
        %s217 = scalar_lea.vmem [#allocation2], %s216
        // Predicated region
        $region41: #{tpu_custom_call.1} parent=39 // pred_check
          %p218 = pneg %p43
        $region42: #{tpu_custom_call.1} parent=39 // pred_check_branch
          %220 = sbr.rel (%p218) target = $region44
        $region43: #{tpu_custom_call.1} parent=39 // pred_region
          %221 = dma.done %s214, 2048
        $region44: #{tpu_custom_call.1} parent=39 // pred_fallthru
          _
        %s222 = sand.u32 %s30, 1
        %s223 = scalar_lea.sflag [#allocation3], %s222
        %s224 = sand.u32 %s30, 1
        %s225 = smul.addr %s224, 128
        %s226 = scalar_lea.vmem [#allocation2], %s225
        %p227 = pneg %p43
        %p228 = pneg %p40
        %p229 = pneg %p64
        %p230 = pneg %p61
        %p231 = pneg %p85
        %p232 = pneg %p82
        %p233 = pneg %p106
        %p234 = pneg %p103
        %p235 = pneg %p127
        %p236 = pneg %p124
        %p237 = pneg %p153
        %p238 = pneg %p150
        %s239 = sand.u32 %s140, 1
        %s240 = scalar_lea.sflag [#allocation4], %s239
        %s241 = sand.u32 %s140, 1
        %s242 = smul.addr %s241, 128
        %s243 = scalar_lea.vmem [#allocation5], %s242
        %s244 = smul.u32 2, %s22
        %s245 = smul.u32 2, %s22
        %v246 = vld [vmem:[%s217] sm:$0xff]
        %v247 = vld [vmem:[%s217 + $0x8] sm:$0xff]
        %v248 = vld [vmem:[%s217 + $0x10] sm:$0xff]
        %v249 = vld [vmem:[%s217 + $0x18] sm:$0xff]
        %v250 = vld [vmem:[%s217 + $0x20] sm:$0xff]
        %v251 = vld [vmem:[%s217 + $0x28] sm:$0xff]
        %v252 = vld [vmem:[%s217 + $0x30] sm:$0xff]
        %v253 = vld [vmem:[%s217 + $0x38] sm:$0xff]
        %v254 = vld [vmem:[%s217 + $0x40] sm:$0xff]
        %v255 = vld [vmem:[%s217 + $0x48] sm:$0xff]
        %v256 = vld [vmem:[%s217 + $0x50] sm:$0xff]
        %v257 = vld [vmem:[%s217 + $0x58] sm:$0xff]
        %v258 = vld [vmem:[%s217 + $0x60] sm:$0xff]
        %v259 = vld [vmem:[%s217 + $0x68] sm:$0xff]
        %v260 = vld [vmem:[%s217 + $0x70] sm:$0xff]
        %v261 = vld [vmem:[%s217 + $0x78] sm:$0xff]
        %vm262 = vcmask 916480
        %v263 = vsel %vm262, %v247, 0.0
        %v264 = vadd.f32 %v246, %v263
        %265 = vadd.xlane.f32.xlu0 %v264
        %v266 = vpop.xlane.xlu0 %265
        %v267 = vsel %vm262, %v249, 0.0
        %v268 = vadd.f32 %v248, %v267
        %269 = vadd.xlane.f32.xlu0 %v268
        %v270 = vpop.xlane.xlu0 %269
        %v271 = vsel %vm262, %v251, 0.0
        %v272 = vadd.f32 %v250, %v271
        %273 = vadd.xlane.f32.xlu0 %v272
        %v274 = vpop.xlane.xlu0 %273
        %v275 = vsel %vm262, %v253, 0.0
        %v276 = vadd.f32 %v252, %v275
        %277 = vadd.xlane.f32.xlu0 %v276
        %v278 = vpop.xlane.xlu0 %277
        %v279 = vsel %vm262, %v255, 0.0
        %v280 = vadd.f32 %v254, %v279
        %281 = vadd.xlane.f32.xlu0 %v280
        %v282 = vpop.xlane.xlu0 %281
        %v283 = vsel %vm262, %v257, 0.0
        %v284 = vadd.f32 %v256, %v283
        %285 = vadd.xlane.f32.xlu0 %v284
        %v286 = vpop.xlane.xlu0 %285
        %v287 = vsel %vm262, %v259, 0.0
        %v288 = vadd.f32 %v258, %v287
        %289 = vadd.xlane.f32.xlu0 %v288
        %v290 = vpop.xlane.xlu0 %289
        %v291 = vsel %vm262, %v261, 0.0
        %v292 = vadd.f32 %v260, %v291
        %293 = vadd.xlane.f32.xlu0 %v292
        %v294 = vpop.xlane.xlu0 %293
        %v295 = vmul.f32 %v266, 0.004166667
        %v296 = vmul.f32 %v270, 0.004166667
        %v297 = vmul.f32 %v274, 0.004166667
        %v298 = vmul.f32 %v278, 0.004166667
        %v299 = vmul.f32 %v282, 0.004166667
        %v300 = vmul.f32 %v286, 0.004166667
        %v301 = vmul.f32 %v290, 0.004166667
        %v302 = vmul.f32 %v294, 0.004166667
        %v303 = vld [vmem:[%s1] sm:$0xff]
        %v304 = vld [vmem:[%s1 + $0x8] sm:$0xff]
        %v305 = vld [vmem:[%s1 + $0x10] sm:$0xff]
        %v306 = vld [vmem:[%s1 + $0x18] sm:$0xff]
        %v307 = vld [vmem:[%s2] sm:$0x1]
        %v309 = vlaneseq
        %v310 = vshrl.u32 %v309, 7
        %v311 = vsub.s32 0, %v310
        %v312 = vrot.slane %v307, %v311
        %v322 = vlaneseq
        %v323 = vand.u32 %v322, 127
        %v324 = vlaneseq
        %v325 = vshrl.u32 %v324, 7
        %v326 = vsub.s32 %v323, %v325
        %v327 = vrot.slane %v295, %v326
        %v328 = vadd.s32 %v323, 4294967288
        %v329 = vlaneseq
        %v330 = vshrl.u32 %v329, 7
        %v331 = vsub.s32 %v328, %v330
        %v332 = vrot.slane %v296, %v331
        %vm333 = vcmask 130112
        %v334 = vsel %vm333, %v332, %v327
        %v335 = vadd.s32 %v323, 4294967280
        %v336 = vlaneseq
        %v337 = vshrl.u32 %v336, 7
        %v338 = vsub.s32 %v335, %v337
        %v339 = vrot.slane %v297, %v338
        %vm340 = vcmask 195712
        %v341 = vsel %vm340, %v339, %v334
        %v342 = vadd.s32 %v323, 4294967272
        %v343 = vlaneseq
        %v344 = vshrl.u32 %v343, 7
        %v345 = vsub.s32 %v342, %v344
        %v346 = vrot.slane %v298, %v345
        %vm347 = vcmask 261312
        %v348 = vsel %vm347, %v346, %v341
        %v349 = vlaneseq
        %v350 = vshrl.u32 %v349, 7
        %v351 = vsub.s32 %v323, %v350
        %v352 = vrot.slane %v299, %v351
        %v353 = vlaneseq
        %v354 = vshrl.u32 %v353, 7
        %v355 = vsub.s32 %v328, %v354
        %v356 = vrot.slane %v300, %v355
        %v357 = vsel %vm333, %v356, %v352
        %v358 = vlaneseq
        %v359 = vshrl.u32 %v358, 7
        %v360 = vsub.s32 %v335, %v359
        %v361 = vrot.slane %v301, %v360
        %v362 = vsel %vm340, %v361, %v357
        %v363 = vlaneseq
        %v364 = vshrl.u32 %v363, 7
        %v365 = vsub.s32 %v342, %v364
        %v366 = vrot.slane %v302, %v365
        %v367 = vsel %vm347, %v366, %v362
        %vm368 = vcmask 1041409
        %v369 = vsel %vm368, %v367, %v348
        %vm370 = vcmask 261120
        %v371 = vsel %vm370, %v369, 0
        %373 = vmatprep.subr.mxu0 0.0
        %v374 = vand.u32 %v303, 4294901760
        %375 = vmatpush1.msra.mxu0 %v374
        %376 = vmatprep.subr.mxu0 0.0
        %v377 = vand.u32 %v304, 4294901760
        %378 = vmatpush1.msra.mxu0 %v377
        %379 = vmatprep.subr.mxu0 0.0
        %v380 = vand.u32 %v305, 4294901760
        %381 = vmatpush1.msra.mxu0 %v380
        %382 = vmatprep.subr.mxu0 0.0
        %v383 = vand.u32 %v306, 4294901760
        %384 = vmatpush1.msra.mxu0 %v383
        %385 = vmatprep.subr.mxu0 0.0
        %386 = vmatpush1.msra.mxu0 0.0
        %387 = vmatprep.subr.mxu0 0.0
        %388 = vmatpush1.msra.mxu0 0.0
        %389 = vmatprep.subr.mxu0 0.0
        %390 = vmatpush1.msra.mxu0 0.0
        %391 = vmatprep.subr.mxu0 0.0
        %392 = vmatpush1.msra.mxu0 0.0
        %393 = vmatprep.subr.mxu0 0.0
        %394 = vmatpush1.msra.mxu0 0.0
        %395 = vmatprep.subr.mxu0 0.0
        %396 = vmatpush1.msra.mxu0 0.0
        %397 = vmatprep.subr.mxu0 0.0
        %398 = vmatpush1.msra.mxu0 0.0
        %399 = vmatprep.subr.mxu0 0.0
        %400 = vmatpush1.msra.mxu0 0.0
        %401 = vmatprep.subr.mxu0 0.0
        %402 = vmatpush1.msra.mxu0 0.0
        %403 = vmatprep.subr.mxu0 0.0
        %404 = vmatpush1.msra.mxu0 0.0
        %405 = vmatprep.subr.mxu0 0.0
        %406 = vmatpush1.msra.mxu0 0.0
        %407 = vmatprep.subr.mxu0 0.0
        %408 = vmatpush1.msra.mxu0 0.0
        %409 = vmatprep.subr.mxu0 0.0
        %410 = vmatpush1.msra.mxu0 0.0
        %411 = vmatprep.subr.mxu0 0.0
        %412 = vmatpush1.msra.mxu0 0.0
        %413 = vmatprep.subr.mxu0 0.0
        %414 = vmatpush1.msra.mxu0 0.0
        %415 = vmatprep.subr.mxu0 0.0
        %416 = vmatpush1.msra.mxu0 0.0
        %417 = vmatprep.subr.mxu0 0.0
        %418 = vmatpush1.msra.mxu0 0.0
        %419 = vmatprep.subr.mxu0 0.0
        %420 = vmatpush1.msra.mxu0 0.0
        %421 = vmatprep.subr.mxu0 0.0
        %422 = vmatpush1.msra.mxu0 0.0
        %423 = vmatprep.subr.mxu0 0.0
        %424 = vmatpush1.msra.mxu0 0.0
        %425 = vmatprep.subr.mxu0 0.0
        %426 = vmatpush1.msra.mxu0 0.0
        %427 = vmatprep.subr.mxu0 0.0
        %428 = vmatpush1.msra.mxu0 0.0
        %429 = vmatprep.subr.mxu0 0.0
        %430 = vmatpush1.msra.mxu0 0.0
        %431 = vmatprep.subr.mxu0 0.0
        %432 = vmatpush1.msra.mxu0 0.0
        %433 = vmatprep.subr.mxu0 0.0
        %434 = vmatpush1.msra.mxu0 0.0
        %435 = vmatprep.subr.mxu0 0.0
        %436 = vmatpush1.msra.mxu0 0.0
        %437 = vmatprep.subr.mxu0 0.0
        %438 = vmatpush1.msra.mxu0 0.0
        %439 = vmatprep.subr.mxu0 0.0
        %440 = vmatpush1.msra.mxu0 0.0
        %441 = vmatprep.mubr.f32.mxu0 0.0
        %v442 = vand.u32 %v371, 4294901760
        %v443 = vsub.f32 %v371, %v442
        %v444 = vand.u32 %v443, 4294901760
        %v445 = vsub.f32 %v443, %v444
        %v446 = vand.u32 %v445, 4294901760
        %447 = vmatmul.mubr.f32.gmra.mrb[0].mxu0 %v446
        %v448 = vpop.f32.mrb[0].mxu0
        %v449 = vadd.f32 %v312, %v448
        %v450 = vpop.f32.mrb[0].mxu0
        %451 = vdwg.mxu0
        %452 = vmatprep.subr.mxu0 0.0
        %v453 = vand.u32 %v303, 4294901760
        %v454 = vsub.f32 %v303, %v453
        %v455 = vand.u32 %v454, 4294901760
        %v456 = vsub.f32 %v454, %v455
        %v457 = vand.u32 %v456, 4294901760
        %458 = vmatpush1.msra.mxu0 %v457
        %459 = vmatprep.subr.mxu0 0.0
        %v460 = vand.u32 %v304, 4294901760
        %v461 = vsub.f32 %v304, %v460
        %v462 = vand.u32 %v461, 4294901760
        %v463 = vsub.f32 %v461, %v462
        %v464 = vand.u32 %v463, 4294901760
        %465 = vmatpush1.msra.mxu0 %v464
        %466 = vmatprep.subr.mxu0 0.0
        %v467 = vand.u32 %v305, 4294901760
        %v468 = vsub.f32 %v305, %v467
        %v469 = vand.u32 %v468, 4294901760
        %v470 = vsub.f32 %v468, %v469
        %v471 = vand.u32 %v470, 4294901760
        %472 = vmatpush1.msra.mxu0 %v471
        %473 = vmatprep.subr.mxu0 0.0
        %v474 = vand.u32 %v306, 4294901760
        %v475 = vsub.f32 %v306, %v474
        %v476 = vand.u32 %v475, 4294901760
        %v477 = vsub.f32 %v475, %v476
        %v478 = vand.u32 %v477, 4294901760
        %479 = vmatpush1.msra.mxu0 %v478
        %480 = vmatprep.subr.mxu0 0.0
        %481 = vmatpush1.msra.mxu0 0.0
        %482 = vmatprep.subr.mxu0 0.0
        %483 = vmatpush1.msra.mxu0 0.0
        %484 = vmatprep.subr.mxu0 0.0
        %485 = vmatpush1.msra.mxu0 0.0
        %486 = vmatprep.subr.mxu0 0.0
        %487 = vmatpush1.msra.mxu0 0.0
        %488 = vmatprep.subr.mxu0 0.0
        %489 = vmatpush1.msra.mxu0 0.0
        %490 = vmatprep.subr.mxu0 0.0
        %491 = vmatpush1.msra.mxu0 0.0
        %492 = vmatprep.subr.mxu0 0.0
        %493 = vmatpush1.msra.mxu0 0.0
        %494 = vmatprep.subr.mxu0 0.0
        %495 = vmatpush1.msra.mxu0 0.0
        %496 = vmatprep.subr.mxu0 0.0
        %497 = vmatpush1.msra.mxu0 0.0
        %498 = vmatprep.subr.mxu0 0.0
        %499 = vmatpush1.msra.mxu0 0.0
        %500 = vmatprep.subr.mxu0 0.0
        %501 = vmatpush1.msra.mxu0 0.0
        %502 = vmatprep.subr.mxu0 0.0
        %503 = vmatpush1.msra.mxu0 0.0
        %504 = vmatprep.subr.mxu0 0.0
        %505 = vmatpush1.msra.mxu0 0.0
        %506 = vmatprep.subr.mxu0 0.0
        %507 = vmatpush1.msra.mxu0 0.0
        %508 = vmatprep.subr.mxu0 0.0
        %509 = vmatpush1.msra.mxu0 0.0
        %510 = vmatprep.subr.mxu0 0.0
        %511 = vmatpush1.msra.mxu0 0.0
        %512 = vmatprep.subr.mxu0 0.0
        %513 = vmatpush1.msra.mxu0 0.0
        %514 = vmatprep.subr.mxu0 0.0
        %515 = vmatpush1.msra.mxu0 0.0
        %516 = vmatprep.subr.mxu0 0.0
        %517 = vmatpush1.msra.mxu0 0.0
        %518 = vmatprep.subr.mxu0 0.0
        %519 = vmatpush1.msra.mxu0 0.0
        %520 = vmatprep.subr.mxu0 0.0
        %521 = vmatpush1.msra.mxu0 0.0
        %522 = vmatprep.subr.mxu0 0.0
        %523 = vmatpush1.msra.mxu0 0.0
        %524 = vmatprep.subr.mxu0 0.0
        %525 = vmatpush1.msra.mxu0 0.0
        %526 = vmatprep.subr.mxu0 0.0
        %527 = vmatpush1.msra.mxu0 0.0
        %528 = vmatprep.subr.mxu0 0.0
        %529 = vmatpush1.msra.mxu0 0.0
        %530 = vmatprep.subr.mxu0 0.0
        %531 = vmatpush1.msra.mxu0 0.0
        %532 = vmatprep.subr.mxu0 0.0
        %533 = vmatpush1.msra.mxu0 0.0
        %534 = vmatprep.subr.mxu0 0.0
        %535 = vmatpush1.msra.mxu0 0.0
        %536 = vmatprep.mubr.f32.mxu0 0.0
        %v537 = vand.u32 %v371, 4294901760
        %538 = vmatmul.mubr.f32.gmra.mrb[0].mxu0 %v537
        %v539 = vpop.f32.mrb[0].mxu0
        %v540 = vadd.f32 %v449, %v539
        %v541 = vpop.f32.mrb[0].mxu0
        %542 = vdwg.mxu0
        %543 = vmatprep.subr.mxu0 0.0
        %v544 = vand.u32 %v303, 4294901760
        %v545 = vsub.f32 %v303, %v544
        %546 = vmatpush1.msra.mxu0 %v545
        %547 = vmatprep.subr.mxu0 0.0
        %v548 = vand.u32 %v304, 4294901760
        %v549 = vsub.f32 %v304, %v548
        %550 = vmatpush1.msra.mxu0 %v549
        %551 = vmatprep.subr.mxu0 0.0
        %v552 = vand.u32 %v305, 4294901760
        %v553 = vsub.f32 %v305, %v552
        %554 = vmatpush1.msra.mxu0 %v553
        %555 = vmatprep.subr.mxu0 0.0
        %v556 = vand.u32 %v306, 4294901760
        %v557 = vsub.f32 %v306, %v556
        %558 = vmatpush1.msra.mxu0 %v557
        %559 = vmatprep.subr.mxu0 0.0
        %560 = vmatpush1.msra.mxu0 0.0
        %561 = vmatprep.subr.mxu0 0.0
        %562 = vmatpush1.msra.mxu0 0.0
        %563 = vmatprep.subr.mxu0 0.0
        %564 = vmatpush1.msra.mxu0 0.0
        %565 = vmatprep.subr.mxu0 0.0
        %566 = vmatpush1.msra.mxu0 0.0
        %567 = vmatprep.subr.mxu0 0.0
        %568 = vmatpush1.msra.mxu0 0.0
        %569 = vmatprep.subr.mxu0 0.0
        %570 = vmatpush1.msra.mxu0 0.0
        %571 = vmatprep.subr.mxu0 0.0
        %572 = vmatpush1.msra.mxu0 0.0
        %573 = vmatprep.subr.mxu0 0.0
        %574 = vmatpush1.msra.mxu0 0.0
        %575 = vmatprep.subr.mxu0 0.0
        %576 = vmatpush1.msra.mxu0 0.0
        %577 = vmatprep.subr.mxu0 0.0
        %578 = vmatpush1.msra.mxu0 0.0
        %579 = vmatprep.subr.mxu0 0.0
        %580 = vmatpush1.msra.mxu0 0.0
        %581 = vmatprep.subr.mxu0 0.0
        %582 = vmatpush1.msra.mxu0 0.0
        %583 = vmatprep.subr.mxu0 0.0
        %584 = vmatpush1.msra.mxu0 0.0
        %585 = vmatprep.subr.mxu0 0.0
        %586 = vmatpush1.msra.mxu0 0.0
        %587 = vmatprep.subr.mxu0 0.0
        %588 = vmatpush1.msra.mxu0 0.0
        %589 = vmatprep.subr.mxu0 0.0
        %590 = vmatpush1.msra.mxu0 0.0
        %591 = vmatprep.subr.mxu0 0.0
        %592 = vmatpush1.msra.mxu0 0.0
        %593 = vmatprep.subr.mxu0 0.0
        %594 = vmatpush1.msra.mxu0 0.0
        %595 = vmatprep.subr.mxu0 0.0
        %596 = vmatpush1.msra.mxu0 0.0
        %597 = vmatprep.subr.mxu0 0.0
        %598 = vmatpush1.msra.mxu0 0.0
        %599 = vmatprep.subr.mxu0 0.0
        %600 = vmatpush1.msra.mxu0 0.0
        %601 = vmatprep.subr.mxu0 0.0
        %602 = vmatpush1.msra.mxu0 0.0
        %603 = vmatprep.subr.mxu0 0.0
        %604 = vmatpush1.msra.mxu0 0.0
        %605 = vmatprep.subr.mxu0 0.0
        %606 = vmatpush1.msra.mxu0 0.0
        %607 = vmatprep.subr.mxu0 0.0
        %608 = vmatpush1.msra.mxu0 0.0
        %609 = vmatprep.subr.mxu0 0.0
        %610 = vmatpush1.msra.mxu0 0.0
        %611 = vmatprep.subr.mxu0 0.0
        %612 = vmatpush1.msra.mxu0 0.0
        %613 = vmatprep.subr.mxu0 0.0
        %614 = vmatpush1.msra.mxu0 0.0
        %615 = vmatprep.mubr.f32.mxu0 0.0
        %v616 = vand.u32 %v371, 4294901760
        %v617 = vsub.f32 %v371, %v616
        %618 = vmatmul.mubr.f32.gmra.mrb[0].mxu0 %v617
        %v619 = vpop.f32.mrb[0].mxu0
        %v620 = vadd.f32 %v540, %v619
        %v621 = vpop.f32.mrb[0].mxu0
        %622 = vdwg.mxu0
        %623 = vmatprep.subr.mxu0 0.0
        %v624 = vand.u32 %v303, 4294901760
        %625 = vmatpush1.msra.mxu0 %v624
        %626 = vmatprep.subr.mxu0 0.0
        %v627 = vand.u32 %v304, 4294901760
        %628 = vmatpush1.msra.mxu0 %v627
        %629 = vmatprep.subr.mxu0 0.0
        %v630 = vand.u32 %v305, 4294901760
        %631 = vmatpush1.msra.mxu0 %v630
        %632 = vmatprep.subr.mxu0 0.0
        %v633 = vand.u32 %v306, 4294901760
        %634 = vmatpush1.msra.mxu0 %v633
        %635 = vmatprep.subr.mxu0 0.0
        %636 = vmatpush1.msra.mxu0 0.0
        %637 = vmatprep.subr.mxu0 0.0
        %638 = vmatpush1.msra.mxu0 0.0
        %639 = vmatprep.subr.mxu0 0.0
        %640 = vmatpush1.msra.mxu0 0.0
        %641 = vmatprep.subr.mxu0 0.0
        %642 = vmatpush1.msra.mxu0 0.0
        %643 = vmatprep.subr.mxu0 0.0
        %644 = vmatpush1.msra.mxu0 0.0
        %645 = vmatprep.subr.mxu0 0.0
        %646 = vmatpush1.msra.mxu0 0.0
        %647 = vmatprep.subr.mxu0 0.0
        %648 = vmatpush1.msra.mxu0 0.0
        %649 = vmatprep.subr.mxu0 0.0
        %650 = vmatpush1.msra.mxu0 0.0
        %651 = vmatprep.subr.mxu0 0.0
        %652 = vmatpush1.msra.mxu0 0.0
        %653 = vmatprep.subr.mxu0 0.0
        %654 = vmatpush1.msra.mxu0 0.0
        %655 = vmatprep.subr.mxu0 0.0
        %656 = vmatpush1.msra.mxu0 0.0
        %657 = vmatprep.subr.mxu0 0.0
        %658 = vmatpush1.msra.mxu0 0.0
        %659 = vmatprep.subr.mxu0 0.0
        %660 = vmatpush1.msra.mxu0 0.0
        %661 = vmatprep.subr.mxu0 0.0
        %662 = vmatpush1.msra.mxu0 0.0
        %663 = vmatprep.subr.mxu0 0.0
        %664 = vmatpush1.msra.mxu0 0.0
        %665 = vmatprep.subr.mxu0 0.0
        %666 = vmatpush1.msra.mxu0 0.0
        %667 = vmatprep.subr.mxu0 0.0
        %668 = vmatpush1.msra.mxu0 0.0
        %669 = vmatprep.subr.mxu0 0.0
        %670 = vmatpush1.msra.mxu0 0.0
        %671 = vmatprep.subr.mxu0 0.0
        %672 = vmatpush1.msra.mxu0 0.0
        %673 = vmatprep.subr.mxu0 0.0
        %674 = vmatpush1.msra.mxu0 0.0
        %675 = vmatprep.subr.mxu0 0.0
        %676 = vmatpush1.msra.mxu0 0.0
        %677 = vmatprep.subr.mxu0 0.0
        %678 = vmatpush1.msra.mxu0 0.0
        %679 = vmatprep.subr.mxu0 0.0
        %680 = vmatpush1.msra.mxu0 0.0
        %681 = vmatprep.subr.mxu0 0.0
        %682 = vmatpush1.msra.mxu0 0.0
        %683 = vmatprep.subr.mxu0 0.0
        %684 = vmatpush1.msra.mxu0 0.0
        %685 = vmatprep.subr.mxu0 0.0
        %686 = vmatpush1.msra.mxu0 0.0
        %687 = vmatprep.subr.mxu0 0.0
        %688 = vmatpush1.msra.mxu0 0.0
        %689 = vmatprep.subr.mxu0 0.0
        %690 = vmatpush1.msra.mxu0 0.0
        %691 = vmatprep.mubr.f32.mxu0 0.0
        %v692 = vand.u32 %v371, 4294901760
        %v693 = vsub.f32 %v371, %v692
        %v694 = vand.u32 %v693, 4294901760
        %695 = vmatmul.mubr.f32.gmra.mrb[0].mxu0 %v694
        %v696 = vpop.f32.mrb[0].mxu0
        %v697 = vadd.f32 %v620, %v696
        %v698 = vpop.f32.mrb[0].mxu0
        %699 = vdwg.mxu0
        %700 = vmatprep.subr.mxu0 0.0
        %v701 = vand.u32 %v303, 4294901760
        %v702 = vsub.f32 %v303, %v701
        %v703 = vand.u32 %v702, 4294901760
        %704 = vmatpush1.msra.mxu0 %v703
        %705 = vmatprep.subr.mxu0 0.0
        %v706 = vand.u32 %v304, 4294901760
        %v707 = vsub.f32 %v304, %v706
        %v708 = vand.u32 %v707, 4294901760
        %709 = vmatpush1.msra.mxu0 %v708
        %710 = vmatprep.subr.mxu0 0.0
        %v711 = vand.u32 %v305, 4294901760
        %v712 = vsub.f32 %v305, %v711
        %v713 = vand.u32 %v712, 4294901760
        %714 = vmatpush1.msra.mxu0 %v713
        %715 = vmatprep.subr.mxu0 0.0
        %v716 = vand.u32 %v306, 4294901760
        %v717 = vsub.f32 %v306, %v716
        %v718 = vand.u32 %v717, 4294901760
        %719 = vmatpush1.msra.mxu0 %v718
        %720 = vmatprep.subr.mxu0 0.0
        %721 = vmatpush1.msra.mxu0 0.0
        %722 = vmatprep.subr.mxu0 0.0
        %723 = vmatpush1.msra.mxu0 0.0
        %724 = vmatprep.subr.mxu0 0.0
        %725 = vmatpush1.msra.mxu0 0.0
        %726 = vmatprep.subr.mxu0 0.0
        %727 = vmatpush1.msra.mxu0 0.0
        %728 = vmatprep.subr.mxu0 0.0
        %729 = vmatpush1.msra.mxu0 0.0
        %730 = vmatprep.subr.mxu0 0.0
        %731 = vmatpush1.msra.mxu0 0.0
        %732 = vmatprep.subr.mxu0 0.0
        %733 = vmatpush1.msra.mxu0 0.0
        %734 = vmatprep.subr.mxu0 0.0
        %735 = vmatpush1.msra.mxu0 0.0
        %736 = vmatprep.subr.mxu0 0.0
        %737 = vmatpush1.msra.mxu0 0.0
        %738 = vmatprep.subr.mxu0 0.0
        %739 = vmatpush1.msra.mxu0 0.0
        %740 = vmatprep.subr.mxu0 0.0
        %741 = vmatpush1.msra.mxu0 0.0
        %742 = vmatprep.subr.mxu0 0.0
        %743 = vmatpush1.msra.mxu0 0.0
        %744 = vmatprep.subr.mxu0 0.0
        %745 = vmatpush1.msra.mxu0 0.0
        %746 = vmatprep.subr.mxu0 0.0
        %747 = vmatpush1.msra.mxu0 0.0
        %748 = vmatprep.subr.mxu0 0.0
        %749 = vmatpush1.msra.mxu0 0.0
        %750 = vmatprep.subr.mxu0 0.0
        %751 = vmatpush1.msra.mxu0 0.0
        %752 = vmatprep.subr.mxu0 0.0
        %753 = vmatpush1.msra.mxu0 0.0
        %754 = vmatprep.subr.mxu0 0.0
        %755 = vmatpush1.msra.mxu0 0.0
        %756 = vmatprep.subr.mxu0 0.0
        %757 = vmatpush1.msra.mxu0 0.0
        %758 = vmatprep.subr.mxu0 0.0
        %759 = vmatpush1.msra.mxu0 0.0
        %760 = vmatprep.subr.mxu0 0.0
        %761 = vmatpush1.msra.mxu0 0.0
        %762 = vmatprep.subr.mxu0 0.0
        %763 = vmatpush1.msra.mxu0 0.0
        %764 = vmatprep.subr.mxu0 0.0
        %765 = vmatpush1.msra.mxu0 0.0
        %766 = vmatprep.subr.mxu0 0.0
        %767 = vmatpush1.msra.mxu0 0.0
        %768 = vmatprep.subr.mxu0 0.0
        %769 = vmatpush1.msra.mxu0 0.0
        %770 = vmatprep.subr.mxu0 0.0
        %771 = vmatpush1.msra.mxu0 0.0
        %772 = vmatprep.subr.mxu0 0.0
        %773 = vmatpush1.msra.mxu0 0.0
        %774 = vmatprep.subr.mxu0 0.0
        %775 = vmatpush1.msra.mxu0 0.0
        %776 = vmatprep.mubr.f32.mxu0 0.0
        %v777 = vand.u32 %v371, 4294901760
        %778 = vmatmul.mubr.f32.gmra.mrb[0].mxu0 %v777
        %v779 = vpop.f32.mrb[0].mxu0
        %v780 = vadd.f32 %v697, %v779
        %v781 = vpop.f32.mrb[0].mxu0
        %782 = vdwg.mxu0
        %783 = vmatprep.subr.mxu0 0.0
        %v784 = vand.u32 %v303, 4294901760
        %785 = vmatpush1.msra.mxu0 %v784
        %786 = vmatprep.subr.mxu0 0.0
        %v787 = vand.u32 %v304, 4294901760
        %788 = vmatpush1.msra.mxu0 %v787
        %789 = vmatprep.subr.mxu0 0.0
        %v790 = vand.u32 %v305, 4294901760
        %791 = vmatpush1.msra.mxu0 %v790
        %792 = vmatprep.subr.mxu0 0.0
        %v793 = vand.u32 %v306, 4294901760
        %794 = vmatpush1.msra.mxu0 %v793
        %795 = vmatprep.subr.mxu0 0.0
        %796 = vmatpush1.msra.mxu0 0.0
        %797 = vmatprep.subr.mxu0 0.0
        %798 = vmatpush1.msra.mxu0 0.0
        %799 = vmatprep.subr.mxu0 0.0
        %800 = vmatpush1.msra.mxu0 0.0
        %801 = vmatprep.subr.mxu0 0.0
        %802 = vmatpush1.msra.mxu0 0.0
        %803 = vmatprep.subr.mxu0 0.0
        %804 = vmatpush1.msra.mxu0 0.0
        %805 = vmatprep.subr.mxu0 0.0
        %806 = vmatpush1.msra.mxu0 0.0
        %807 = vmatprep.subr.mxu0 0.0
        %808 = vmatpush1.msra.mxu0 0.0
        %809 = vmatprep.subr.mxu0 0.0
        %810 = vmatpush1.msra.mxu0 0.0
        %811 = vmatprep.subr.mxu0 0.0
        %812 = vmatpush1.msra.mxu0 0.0
        %813 = vmatprep.subr.mxu0 0.0
        %814 = vmatpush1.msra.mxu0 0.0
        %815 = vmatprep.subr.mxu0 0.0
        %816 = vmatpush1.msra.mxu0 0.0
        %817 = vmatprep.subr.mxu0 0.0
        %818 = vmatpush1.msra.mxu0 0.0
        %819 = vmatprep.subr.mxu0 0.0
        %820 = vmatpush1.msra.mxu0 0.0
        %821 = vmatprep.subr.mxu0 0.0
        %822 = vmatpush1.msra.mxu0 0.0
        %823 = vmatprep.subr.mxu0 0.0
        %824 = vmatpush1.msra.mxu0 0.0
        %825 = vmatprep.subr.mxu0 0.0
        %826 = vmatpush1.msra.mxu0 0.0
        %827 = vmatprep.subr.mxu0 0.0
        %828 = vmatpush1.msra.mxu0 0.0
        %829 = vmatprep.subr.mxu0 0.0
        %830 = vmatpush1.msra.mxu0 0.0
        %831 = vmatprep.subr.mxu0 0.0
        %832 = vmatpush1.msra.mxu0 0.0
        %833 = vmatprep.subr.mxu0 0.0
        %834 = vmatpush1.msra.mxu0 0.0
        %835 = vmatprep.subr.mxu0 0.0
        %836 = vmatpush1.msra.mxu0 0.0
        %837 = vmatprep.subr.mxu0 0.0
        %838 = vmatpush1.msra.mxu0 0.0
        %839 = vmatprep.subr.mxu0 0.0
        %840 = vmatpush1.msra.mxu0 0.0
        %841 = vmatprep.subr.mxu0 0.0
        %842 = vmatpush1.msra.mxu0 0.0
        %843 = vmatprep.subr.mxu0 0.0
        %844 = vmatpush1.msra.mxu0 0.0
        %845 = vmatprep.subr.mxu0 0.0
        %846 = vmatpush1.msra.mxu0 0.0
        %847 = vmatprep.subr.mxu0 0.0
        %848 = vmatpush1.msra.mxu0 0.0
        %849 = vmatprep.subr.mxu0 0.0
        %850 = vmatpush1.msra.mxu0 0.0
        %851 = vmatprep.mubr.f32.mxu0 0.0
        %v852 = vand.u32 %v371, 4294901760
        %853 = vmatmul.mubr.f32.gmra.mrb[0].mxu0 %v852
        %v854 = vpop.f32.mrb[0].mxu0
        %v855 = vadd.f32 %v780, %v854
        %v856 = vpop.f32.mrb[0].mxu0
        %857 = vdwg.mxu0
        %v858 = vmax.f32 %v855, 0.0
        %v859 = vld [vmem:[%s3] sm:$0x3]
        %v860 = vld [vmem:[%s4] sm:$0x1]
        %v862 = vlaneseq
        %v863 = vshrl.u32 %v862, 7
        %v864 = vsub.s32 0, %v863
        %v865 = vrot.slane %v860, %v864
        %vm867 = vcmask 15360
        %v869 = vsel %vm867, %v858, 0
        %vm871 = vcmask 1041408
        %v873 = vsel %vm871, %v859, 0
        %875 = vmatprep.subr.mxu0 0.0
        %v876 = vand.u32 %v873, 4294901760
        %877 = vmatpush1.msra.mxu0 %v876
        %878 = vmatprep.subr.mxu0 0.0
        %879 = vmatpush1.msra.mxu0 0.0
        %880 = vmatprep.subr.mxu0 0.0
        %881 = vmatpush1.msra.mxu0 0.0
        %882 = vmatprep.subr.mxu0 0.0
        %883 = vmatpush1.msra.mxu0 0.0
        %884 = vmatprep.subr.mxu0 0.0
        %885 = vmatpush1.msra.mxu0 0.0
        %886 = vmatprep.subr.mxu0 0.0
        %887 = vmatpush1.msra.mxu0 0.0
        %888 = vmatprep.subr.mxu0 0.0
        %889 = vmatpush1.msra.mxu0 0.0
        %890 = vmatprep.subr.mxu0 0.0
        %891 = vmatpush1.msra.mxu0 0.0
        %892 = vmatprep.subr.mxu0 0.0
        %893 = vmatpush1.msra.mxu0 0.0
        %894 = vmatprep.subr.mxu0 0.0
        %895 = vmatpush1.msra.mxu0 0.0
        %896 = vmatprep.subr.mxu0 0.0
        %897 = vmatpush1.msra.mxu0 0.0
        %898 = vmatprep.subr.mxu0 0.0
        %899 = vmatpush1.msra.mxu0 0.0
        %900 = vmatprep.subr.mxu0 0.0
        %901 = vmatpush1.msra.mxu0 0.0
        %902 = vmatprep.subr.mxu0 0.0
        %903 = vmatpush1.msra.mxu0 0.0
        %904 = vmatprep.subr.mxu0 0.0
        %905 = vmatpush1.msra.mxu0 0.0
        %906 = vmatprep.subr.mxu0 0.0
        %907 = vmatpush1.msra.mxu0 0.0
        %908 = vmatprep.subr.mxu0 0.0
        %909 = vmatpush1.msra.mxu0 0.0
        %910 = vmatprep.subr.mxu0 0.0
        %911 = vmatpush1.msra.mxu0 0.0
        %912 = vmatprep.subr.mxu0 0.0
        %913 = vmatpush1.msra.mxu0 0.0
        %914 = vmatprep.subr.mxu0 0.0
        %915 = vmatpush1.msra.mxu0 0.0
        %916 = vmatprep.subr.mxu0 0.0
        %917 = vmatpush1.msra.mxu0 0.0
        %918 = vmatprep.subr.mxu0 0.0
        %919 = vmatpush1.msra.mxu0 0.0
        %920 = vmatprep.subr.mxu0 0.0
        %921 = vmatpush1.msra.mxu0 0.0
        %922 = vmatprep.subr.mxu0 0.0
        %923 = vmatpush1.msra.mxu0 0.0
        %924 = vmatprep.subr.mxu0 0.0
        %925 = vmatpush1.msra.mxu0 0.0
        %926 = vmatprep.subr.mxu0 0.0
        %927 = vmatpush1.msra.mxu0 0.0
        %928 = vmatprep.subr.mxu0 0.0
        %929 = vmatpush1.msra.mxu0 0.0
        %930 = vmatprep.subr.mxu0 0.0
        %931 = vmatpush1.msra.mxu0 0.0
        %932 = vmatprep.subr.mxu0 0.0
        %933 = vmatpush1.msra.mxu0 0.0
        %934 = vmatprep.subr.mxu0 0.0
        %935 = vmatpush1.msra.mxu0 0.0
        %936 = vmatprep.subr.mxu0 0.0
        %937 = vmatpush1.msra.mxu0 0.0
        %938 = vmatprep.subr.mxu0 0.0
        %939 = vmatpush1.msra.mxu0 0.0
        %940 = vmatprep.mubr.f32.mxu0 0.0
        %v941 = vand.u32 %v869, 4294901760
        %v942 = vsub.f32 %v869, %v941
        %v943 = vand.u32 %v942, 4294901760
        %v944 = vsub.f32 %v942, %v943
        %v945 = vand.u32 %v944, 4294901760
        %946 = vmatmul.mubr.f32.gmra.mrb[0].mxu0 %v945
        %v947 = vpop.f32.mrb[0].mxu0
        %v948 = vadd.f32 %v865, %v947
        %v949 = vpop.f32.mrb[0].mxu0
        %950 = vdwg.mxu0
        %951 = vmatprep.subr.mxu0 0.0
        %v952 = vand.u32 %v873, 4294901760
        %v953 = vsub.f32 %v873, %v952
        %v954 = vand.u32 %v953, 4294901760
        %v955 = vsub.f32 %v953, %v954
        %v956 = vand.u32 %v955, 4294901760
        %957 = vmatpush1.msra.mxu0 %v956
        %958 = vmatprep.subr.mxu0 0.0
        %959 = vmatpush1.msra.mxu0 0.0
        %960 = vmatprep.subr.mxu0 0.0
        %961 = vmatpush1.msra.mxu0 0.0
        %962 = vmatprep.subr.mxu0 0.0
        %963 = vmatpush1.msra.mxu0 0.0
        %964 = vmatprep.subr.mxu0 0.0
        %965 = vmatpush1.msra.mxu0 0.0
        %966 = vmatprep.subr.mxu0 0.0
        %967 = vmatpush1.msra.mxu0 0.0
        %968 = vmatprep.subr.mxu0 0.0
        %969 = vmatpush1.msra.mxu0 0.0
        %970 = vmatprep.subr.mxu0 0.0
        %971 = vmatpush1.msra.mxu0 0.0
        %972 = vmatprep.subr.mxu0 0.0
        %973 = vmatpush1.msra.mxu0 0.0
        %974 = vmatprep.subr.mxu0 0.0
        %975 = vmatpush1.msra.mxu0 0.0
        %976 = vmatprep.subr.mxu0 0.0
        %977 = vmatpush1.msra.mxu0 0.0
        %978 = vmatprep.subr.mxu0 0.0
        %979 = vmatpush1.msra.mxu0 0.0
        %980 = vmatprep.subr.mxu0 0.0
        %981 = vmatpush1.msra.mxu0 0.0
        %982 = vmatprep.subr.mxu0 0.0
        %983 = vmatpush1.msra.mxu0 0.0
        %984 = vmatprep.subr.mxu0 0.0
        %985 = vmatpush1.msra.mxu0 0.0
        %986 = vmatprep.subr.mxu0 0.0
        %987 = vmatpush1.msra.mxu0 0.0
        %988 = vmatprep.subr.mxu0 0.0
        %989 = vmatpush1.msra.mxu0 0.0
        %990 = vmatprep.subr.mxu0 0.0
        %991 = vmatpush1.msra.mxu0 0.0
        %992 = vmatprep.subr.mxu0 0.0
        %993 = vmatpush1.msra.mxu0 0.0
        %994 = vmatprep.subr.mxu0 0.0
        %995 = vmatpush1.msra.mxu0 0.0
        %996 = vmatprep.subr.mxu0 0.0
        %997 = vmatpush1.msra.mxu0 0.0
        %998 = vmatprep.subr.mxu0 0.0
        %999 = vmatpush1.msra.mxu0 0.0
        %1000 = vmatprep.subr.mxu0 0.0
        %1001 = vmatpush1.msra.mxu0 0.0
        %1002 = vmatprep.subr.mxu0 0.0
        %1003 = vmatpush1.msra.mxu0 0.0
        %1004 = vmatprep.subr.mxu0 0.0
        %1005 = vmatpush1.msra.mxu0 0.0
        %1006 = vmatprep.subr.mxu0 0.0
        %1007 = vmatpush1.msra.mxu0 0.0
        %1008 = vmatprep.subr.mxu0 0.0
        %1009 = vmatpush1.msra.mxu0 0.0
        %1010 = vmatprep.subr.mxu0 0.0
        %1011 = vmatpush1.msra.mxu0 0.0
        %1012 = vmatprep.subr.mxu0 0.0
        %1013 = vmatpush1.msra.mxu0 0.0
        %1014 = vmatprep.subr.mxu0 0.0
        %1015 = vmatpush1.msra.mxu0 0.0
        %1016 = vmatprep.subr.mxu0 0.0
        %1017 = vmatpush1.msra.mxu0 0.0
        %1018 = vmatprep.subr.mxu0 0.0
        %1019 = vmatpush1.msra.mxu0 0.0
        %1020 = vmatprep.mubr.f32.mxu0 0.0
        %v1021 = vand.u32 %v869, 4294901760
        %1022 = vmatmul.mubr.f32.gmra.mrb[0].mxu0 %v1021
        %v1023 = vpop.f32.mrb[0].mxu0
        %v1024 = vadd.f32 %v948, %v1023
        %v1025 = vpop.f32.mrb[0].mxu0
        %1026 = vdwg.mxu0
        %1027 = vmatprep.subr.mxu0 0.0
        %v1028 = vand.u32 %v873, 4294901760
        %v1029 = vsub.f32 %v873, %v1028
        %1030 = vmatpush1.msra.mxu0 %v1029
        %1031 = vmatprep.subr.mxu0 0.0
        %1032 = vmatpush1.msra.mxu0 0.0
        %1033 = vmatprep.subr.mxu0 0.0
        %1034 = vmatpush1.msra.mxu0 0.0
        %1035 = vmatprep.subr.mxu0 0.0
        %1036 = vmatpush1.msra.mxu0 0.0
        %1037 = vmatprep.subr.mxu0 0.0
        %1038 = vmatpush1.msra.mxu0 0.0
        %1039 = vmatprep.subr.mxu0 0.0
        %1040 = vmatpush1.msra.mxu0 0.0
        %1041 = vmatprep.subr.mxu0 0.0
        %1042 = vmatpush1.msra.mxu0 0.0
        %1043 = vmatprep.subr.mxu0 0.0
        %1044 = vmatpush1.msra.mxu0 0.0
        %1045 = vmatprep.subr.mxu0 0.0
        %1046 = vmatpush1.msra.mxu0 0.0
        %1047 = vmatprep.subr.mxu0 0.0
        %1048 = vmatpush1.msra.mxu0 0.0
        %1049 = vmatprep.subr.mxu0 0.0
        %1050 = vmatpush1.msra.mxu0 0.0
        %1051 = vmatprep.subr.mxu0 0.0
        %1052 = vmatpush1.msra.mxu0 0.0
        %1053 = vmatprep.subr.mxu0 0.0
        %1054 = vmatpush1.msra.mxu0 0.0
        %1055 = vmatprep.subr.mxu0 0.0
        %1056 = vmatpush1.msra.mxu0 0.0
        %1057 = vmatprep.subr.mxu0 0.0
        %1058 = vmatpush1.msra.mxu0 0.0
        %1059 = vmatprep.subr.mxu0 0.0
        %1060 = vmatpush1.msra.mxu0 0.0
        %1061 = vmatprep.subr.mxu0 0.0
        %1062 = vmatpush1.msra.mxu0 0.0
        %1063 = vmatprep.subr.mxu0 0.0
        %1064 = vmatpush1.msra.mxu0 0.0
        %1065 = vmatprep.subr.mxu0 0.0
        %1066 = vmatpush1.msra.mxu0 0.0
        %1067 = vmatprep.subr.mxu0 0.0
        %1068 = vmatpush1.msra.mxu0 0.0
        %1069 = vmatprep.subr.mxu0 0.0
        %1070 = vmatpush1.msra.mxu0 0.0
        %1071 = vmatprep.subr.mxu0 0.0
        %1072 = vmatpush1.msra.mxu0 0.0
        %1073 = vmatprep.subr.mxu0 0.0
        %1074 = vmatpush1.msra.mxu0 0.0
        %1075 = vmatprep.subr.mxu0 0.0
        %1076 = vmatpush1.msra.mxu0 0.0
        %1077 = vmatprep.subr.mxu0 0.0
        %1078 = vmatpush1.msra.mxu0 0.0
        %1079 = vmatprep.subr.mxu0 0.0
        %1080 = vmatpush1.msra.mxu0 0.0
        %1081 = vmatprep.subr.mxu0 0.0
        %1082 = vmatpush1.msra.mxu0 0.0
        %1083 = vmatprep.subr.mxu0 0.0
        %1084 = vmatpush1.msra.mxu0 0.0
        %1085 = vmatprep.subr.mxu0 0.0
        %1086 = vmatpush1.msra.mxu0 0.0
        %1087 = vmatprep.subr.mxu0 0.0
        %1088 = vmatpush1.msra.mxu0 0.0
        %1089 = vmatprep.subr.mxu0 0.0
        %1090 = vmatpush1.msra.mxu0 0.0
        %1091 = vmatprep.subr.mxu0 0.0
        %1092 = vmatpush1.msra.mxu0 0.0
        %1093 = vmatprep.mubr.f32.mxu0 0.0
        %v1094 = vand.u32 %v869, 4294901760
        %v1095 = vsub.f32 %v869, %v1094
        %1096 = vmatmul.mubr.f32.gmra.mrb[0].mxu0 %v1095
        %v1097 = vpop.f32.mrb[0].mxu0
        %v1098 = vadd.f32 %v1024, %v1097
        %v1099 = vpop.f32.mrb[0].mxu0
        %1100 = vdwg.mxu0
        %1101 = vmatprep.subr.mxu0 0.0
        %v1102 = vand.u32 %v873, 4294901760
        %1103 = vmatpush1.msra.mxu0 %v1102
        %1104 = vmatprep.subr.mxu0 0.0
        %1105 = vmatpush1.msra.mxu0 0.0
        %1106 = vmatprep.subr.mxu0 0.0
        %1107 = vmatpush1.msra.mxu0 0.0
        %1108 = vmatprep.subr.mxu0 0.0
        %1109 = vmatpush1.msra.mxu0 0.0
        %1110 = vmatprep.subr.mxu0 0.0
        %1111 = vmatpush1.msra.mxu0 0.0
        %1112 = vmatprep.subr.mxu0 0.0
        %1113 = vmatpush1.msra.mxu0 0.0
        %1114 = vmatprep.subr.mxu0 0.0
        %1115 = vmatpush1.msra.mxu0 0.0
        %1116 = vmatprep.subr.mxu0 0.0
        %1117 = vmatpush1.msra.mxu0 0.0
        %1118 = vmatprep.subr.mxu0 0.0
        %1119 = vmatpush1.msra.mxu0 0.0
        %1120 = vmatprep.subr.mxu0 0.0
        %1121 = vmatpush1.msra.mxu0 0.0
        %1122 = vmatprep.subr.mxu0 0.0
        %1123 = vmatpush1.msra.mxu0 0.0
        %1124 = vmatprep.subr.mxu0 0.0
        %1125 = vmatpush1.msra.mxu0 0.0
        %1126 = vmatprep.subr.mxu0 0.0
        %1127 = vmatpush1.msra.mxu0 0.0
        %1128 = vmatprep.subr.mxu0 0.0
        %1129 = vmatpush1.msra.mxu0 0.0
        %1130 = vmatprep.subr.mxu0 0.0
        %1131 = vmatpush1.msra.mxu0 0.0
        %1132 = vmatprep.subr.mxu0 0.0
        %1133 = vmatpush1.msra.mxu0 0.0
        %1134 = vmatprep.subr.mxu0 0.0
        %1135 = vmatpush1.msra.mxu0 0.0
        %1136 = vmatprep.subr.mxu0 0.0
        %1137 = vmatpush1.msra.mxu0 0.0
        %1138 = vmatprep.subr.mxu0 0.0
        %1139 = vmatpush1.msra.mxu0 0.0
        %1140 = vmatprep.subr.mxu0 0.0
        %1141 = vmatpush1.msra.mxu0 0.0
        %1142 = vmatprep.subr.mxu0 0.0
        %1143 = vmatpush1.msra.mxu0 0.0
        %1144 = vmatprep.subr.mxu0 0.0
        %1145 = vmatpush1.msra.mxu0 0.0
        %1146 = vmatprep.subr.mxu0 0.0
        %1147 = vmatpush1.msra.mxu0 0.0
        %1148 = vmatprep.subr.mxu0 0.0
        %1149 = vmatpush1.msra.mxu0 0.0
        %1150 = vmatprep.subr.mxu0 0.0
        %1151 = vmatpush1.msra.mxu0 0.0
        %1152 = vmatprep.subr.mxu0 0.0
        %1153 = vmatpush1.msra.mxu0 0.0
        %1154 = vmatprep.subr.mxu0 0.0
        %1155 = vmatpush1.msra.mxu0 0.0
        %1156 = vmatprep.subr.mxu0 0.0
        %1157 = vmatpush1.msra.mxu0 0.0
        %1158 = vmatprep.subr.mxu0 0.0
        %1159 = vmatpush1.msra.mxu0 0.0
        %1160 = vmatprep.subr.mxu0 0.0
        %1161 = vmatpush1.msra.mxu0 0.0
        %1162 = vmatprep.subr.mxu0 0.0
        %1163 = vmatpush1.msra.mxu0 0.0
        %1164 = vmatprep.subr.mxu0 0.0
        %1165 = vmatpush1.msra.mxu0 0.0
        %1166 = vmatprep.mubr.f32.mxu0 0.0
        %v1167 = vand.u32 %v869, 4294901760
        %v1168 = vsub.f32 %v869, %v1167
        %v1169 = vand.u32 %v1168, 4294901760
        %1170 = vmatmul.mubr.f32.gmra.mrb[0].mxu0 %v1169
        %v1171 = vpop.f32.mrb[0].mxu0
        %v1172 = vadd.f32 %v1098, %v1171
        %v1173 = vpop.f32.mrb[0].mxu0
        %1174 = vdwg.mxu0
        %1175 = vmatprep.subr.mxu0 0.0
        %v1176 = vand.u32 %v873, 4294901760
        %v1177 = vsub.f32 %v873, %v1176
        %v1178 = vand.u32 %v1177, 4294901760
        %1179 = vmatpush1.msra.mxu0 %v1178
        %1180 = vmatprep.subr.mxu0 0.0
        %1181 = vmatpush1.msra.mxu0 0.0
        %1182 = vmatprep.subr.mxu0 0.0
        %1183 = vmatpush1.msra.mxu0 0.0
        %1184 = vmatprep.subr.mxu0 0.0
        %1185 = vmatpush1.msra.mxu0 0.0
        %1186 = vmatprep.subr.mxu0 0.0
        %1187 = vmatpush1.msra.mxu0 0.0
        %1188 = vmatprep.subr.mxu0 0.0
        %1189 = vmatpush1.msra.mxu0 0.0
        %1190 = vmatprep.subr.mxu0 0.0
        %1191 = vmatpush1.msra.mxu0 0.0
        %1192 = vmatprep.subr.mxu0 0.0
        %1193 = vmatpush1.msra.mxu0 0.0
        %1194 = vmatprep.subr.mxu0 0.0
        %1195 = vmatpush1.msra.mxu0 0.0
        %1196 = vmatprep.subr.mxu0 0.0
        %1197 = vmatpush1.msra.mxu0 0.0
        %1198 = vmatprep.subr.mxu0 0.0
        %1199 = vmatpush1.msra.mxu0 0.0
        %1200 = vmatprep.subr.mxu0 0.0
        %1201 = vmatpush1.msra.mxu0 0.0
        %1202 = vmatprep.subr.mxu0 0.0
        %1203 = vmatpush1.msra.mxu0 0.0
        %1204 = vmatprep.subr.mxu0 0.0
        %1205 = vmatpush1.msra.mxu0 0.0
        %1206 = vmatprep.subr.mxu0 0.0
        %1207 = vmatpush1.msra.mxu0 0.0
        %1208 = vmatprep.subr.mxu0 0.0
        %1209 = vmatpush1.msra.mxu0 0.0
        %1210 = vmatprep.subr.mxu0 0.0
        %1211 = vmatpush1.msra.mxu0 0.0
        %1212 = vmatprep.subr.mxu0 0.0
        %1213 = vmatpush1.msra.mxu0 0.0
        %1214 = vmatprep.subr.mxu0 0.0
        %1215 = vmatpush1.msra.mxu0 0.0
        %1216 = vmatprep.subr.mxu0 0.0
        %1217 = vmatpush1.msra.mxu0 0.0
        %1218 = vmatprep.subr.mxu0 0.0
        %1219 = vmatpush1.msra.mxu0 0.0
        %1220 = vmatprep.subr.mxu0 0.0
        %1221 = vmatpush1.msra.mxu0 0.0
        %1222 = vmatprep.subr.mxu0 0.0
        %1223 = vmatpush1.msra.mxu0 0.0
        %1224 = vmatprep.subr.mxu0 0.0
        %1225 = vmatpush1.msra.mxu0 0.0
        %1226 = vmatprep.subr.mxu0 0.0
        %1227 = vmatpush1.msra.mxu0 0.0
        %1228 = vmatprep.subr.mxu0 0.0
        %1229 = vmatpush1.msra.mxu0 0.0
        %1230 = vmatprep.subr.mxu0 0.0
        %1231 = vmatpush1.msra.mxu0 0.0
        %1232 = vmatprep.subr.mxu0 0.0
        %1233 = vmatpush1.msra.mxu0 0.0
        %1234 = vmatprep.subr.mxu0 0.0
        %1235 = vmatpush1.msra.mxu0 0.0
        %1236 = vmatprep.subr.mxu0 0.0
        %1237 = vmatpush1.msra.mxu0 0.0
        %1238 = vmatprep.subr.mxu0 0.0
        %1239 = vmatpush1.msra.mxu0 0.0
        %1240 = vmatprep.subr.mxu0 0.0
        %1241 = vmatpush1.msra.mxu0 0.0
        %1242 = vmatprep.mubr.f32.mxu0 0.0
        %v1243 = vand.u32 %v869, 4294901760
        %1244 = vmatmul.mubr.f32.gmra.mrb[0].mxu0 %v1243
        %v1245 = vpop.f32.mrb[0].mxu0
        %v1246 = vadd.f32 %v1172, %v1245
        %v1247 = vpop.f32.mrb[0].mxu0
        %1248 = vdwg.mxu0
        %1249 = vmatprep.subr.mxu0 0.0
        %v1250 = vand.u32 %v873, 4294901760
        %1251 = vmatpush1.msra.mxu0 %v1250
        %1252 = vmatprep.subr.mxu0 0.0
        %1253 = vmatpush1.msra.mxu0 0.0
        %1254 = vmatprep.subr.mxu0 0.0
        %1255 = vmatpush1.msra.mxu0 0.0
        %1256 = vmatprep.subr.mxu0 0.0
        %1257 = vmatpush1.msra.mxu0 0.0
        %1258 = vmatprep.subr.mxu0 0.0
        %1259 = vmatpush1.msra.mxu0 0.0
        %1260 = vmatprep.subr.mxu0 0.0
        %1261 = vmatpush1.msra.mxu0 0.0
        %1262 = vmatprep.subr.mxu0 0.0
        %1263 = vmatpush1.msra.mxu0 0.0
        %1264 = vmatprep.subr.mxu0 0.0
        %1265 = vmatpush1.msra.mxu0 0.0
        %1266 = vmatprep.subr.mxu0 0.0
        %1267 = vmatpush1.msra.mxu0 0.0
        %1268 = vmatprep.subr.mxu0 0.0
        %1269 = vmatpush1.msra.mxu0 0.0
        %1270 = vmatprep.subr.mxu0 0.0
        %1271 = vmatpush1.msra.mxu0 0.0
        %1272 = vmatprep.subr.mxu0 0.0
        %1273 = vmatpush1.msra.mxu0 0.0
        %1274 = vmatprep.subr.mxu0 0.0
        %1275 = vmatpush1.msra.mxu0 0.0
        %1276 = vmatprep.subr.mxu0 0.0
        %1277 = vmatpush1.msra.mxu0 0.0
        %1278 = vmatprep.subr.mxu0 0.0
        %1279 = vmatpush1.msra.mxu0 0.0
        %1280 = vmatprep.subr.mxu0 0.0
        %1281 = vmatpush1.msra.mxu0 0.0
        %1282 = vmatprep.subr.mxu0 0.0
        %1283 = vmatpush1.msra.mxu0 0.0
        %1284 = vmatprep.subr.mxu0 0.0
        %1285 = vmatpush1.msra.mxu0 0.0
        %1286 = vmatprep.subr.mxu0 0.0
        %1287 = vmatpush1.msra.mxu0 0.0
        %1288 = vmatprep.subr.mxu0 0.0
        %1289 = vmatpush1.msra.mxu0 0.0
        %1290 = vmatprep.subr.mxu0 0.0
        %1291 = vmatpush1.msra.mxu0 0.0
        %1292 = vmatprep.subr.mxu0 0.0
        %1293 = vmatpush1.msra.mxu0 0.0
        %1294 = vmatprep.subr.mxu0 0.0
        %1295 = vmatpush1.msra.mxu0 0.0
        %1296 = vmatprep.subr.mxu0 0.0
        %1297 = vmatpush1.msra.mxu0 0.0
        %1298 = vmatprep.subr.mxu0 0.0
        %1299 = vmatpush1.msra.mxu0 0.0
        %1300 = vmatprep.subr.mxu0 0.0
        %1301 = vmatpush1.msra.mxu0 0.0
        %1302 = vmatprep.subr.mxu0 0.0
        %1303 = vmatpush1.msra.mxu0 0.0
        %1304 = vmatprep.subr.mxu0 0.0
        %1305 = vmatpush1.msra.mxu0 0.0
        %1306 = vmatprep.subr.mxu0 0.0
        %1307 = vmatpush1.msra.mxu0 0.0
        %1308 = vmatprep.subr.mxu0 0.0
        %1309 = vmatpush1.msra.mxu0 0.0
        %1310 = vmatprep.subr.mxu0 0.0
        %1311 = vmatpush1.msra.mxu0 0.0
        %1312 = vmatprep.subr.mxu0 0.0
        %1313 = vmatpush1.msra.mxu0 0.0
        %1314 = vmatprep.mubr.f32.mxu0 0.0
        %v1315 = vand.u32 %v869, 4294901760
        %1316 = vmatmul.mubr.f32.gmra.mrb[0].mxu0 %v1315
        %v1317 = vpop.f32.mrb[0].mxu0
        %v1318 = vadd.f32 %v1246, %v1317
        %v1319 = vpop.f32.mrb[0].mxu0
        %1320 = vdwg.mxu0
        %v1321 = vxor.u32 %v1318, 2147483648
        %v1322 = vmul.f32 %v1321, 1.442695
        %v1323 = vpow.pop %v1322
        %v1324 = vadd.f32 %v1323, 1.0
        %v1325 = vrcp.pop %v1324
        %v1326 = vmul.f32 1.0, %v1325
        %v1327 = vlaneseq
        %v1328 = vshrl.u32 %v1327, 7
        %v1329 = vsub.s32 0, %v1328
        %v1330 = vrot.slane %v1326, %v1329
        %1332 = vbcast.lane.b32.xlu0 %v1330, 256
        %v1333 = vpop.permute.xlu0 %1332
        %s1335 = sor.u32 256, 8
        %1336 = vbcast.lane.b32.xlu0 %v1330, %s1335
        %v1337 = vpop.permute.xlu0 %1336
        %s1339 = sor.u32 256, 16
        %1340 = vbcast.lane.b32.xlu0 %v1330, %s1339
        %v1341 = vpop.permute.xlu0 %1340
        %s1343 = sor.u32 256, 24
        %1344 = vbcast.lane.b32.xlu0 %v1330, %s1343
        %v1345 = vpop.permute.xlu0 %1344
        %v1346 = vlaneseq
        %v1347 = vshrl.u32 %v1346, 7
        %v1348 = vsub.s32 1, %v1347
        %v1349 = vrot.slane %v1326, %v1348
        %1351 = vbcast.lane.b32.xlu0 %v1349, 256
        %v1352 = vpop.permute.xlu0 %1351
        %s1354 = sor.u32 256, 8
        %1355 = vbcast.lane.b32.xlu0 %v1349, %s1354
        %v1356 = vpop.permute.xlu0 %1355
        %s1358 = sor.u32 256, 16
        %1359 = vbcast.lane.b32.xlu0 %v1349, %s1358
        %v1360 = vpop.permute.xlu0 %1359
        %s1362 = sor.u32 256, 24
        %1363 = vbcast.lane.b32.xlu0 %v1349, %s1362
        %v1364 = vpop.permute.xlu0 %1363
        %v1365 = vmul.f32 %v246, %v1333
        %v1366 = vmul.f32 %v247, %v1333
        %v1367 = vmul.f32 %v248, %v1337
        %v1368 = vmul.f32 %v249, %v1337
        %v1369 = vmul.f32 %v250, %v1341
        %v1370 = vmul.f32 %v251, %v1341
        %v1371 = vmul.f32 %v252, %v1345
        %v1372 = vmul.f32 %v253, %v1345
        %v1373 = vmul.f32 %v254, %v1352
        %v1374 = vmul.f32 %v255, %v1352
        %v1375 = vmul.f32 %v256, %v1356
        %v1376 = vmul.f32 %v257, %v1356
        %v1377 = vmul.f32 %v258, %v1360
        %v1378 = vmul.f32 %v259, %v1360
        %v1379 = vmul.f32 %v260, %v1364
        %v1380 = vmul.f32 %v261, %v1364
        %1381 = vst [vmem:[%s243] sm:$0xff] %v1365
        %1382 = vst.msk [vmem:[%s243 + $0x8] sm:$0xff] %vm262, %v1366
        %1383 = vst [vmem:[%s243 + $0x10] sm:$0xff] %v1367
        %1384 = vst.msk [vmem:[%s243 + $0x18] sm:$0xff] %vm262, %v1368
        %1385 = vst [vmem:[%s243 + $0x20] sm:$0xff] %v1369
        %1386 = vst.msk [vmem:[%s243 + $0x28] sm:$0xff] %vm262, %v1370
        %1387 = vst [vmem:[%s243 + $0x30] sm:$0xff] %v1371
        %1388 = vst.msk [vmem:[%s243 + $0x38] sm:$0xff] %vm262, %v1372
        %1389 = vst [vmem:[%s243 + $0x40] sm:$0xff] %v1373
        %1390 = vst.msk [vmem:[%s243 + $0x48] sm:$0xff] %vm262, %v1374
        %1391 = vst [vmem:[%s243 + $0x50] sm:$0xff] %v1375
        %1392 = vst.msk [vmem:[%s243 + $0x58] sm:$0xff] %vm262, %v1376
        %1393 = vst [vmem:[%s243 + $0x60] sm:$0xff] %v1377
        %1394 = vst.msk [vmem:[%s243 + $0x68] sm:$0xff] %vm262, %v1378
        %1395 = vst [vmem:[%s243 + $0x70] sm:$0xff] %v1379
        %1396 = vst.msk [vmem:[%s243 + $0x78] sm:$0xff] %vm262, %v1380
        %s1397 = sand.u32 %s140, 1
        %s1398 = scalar_lea.sflag [#allocation4], %s1397
        %s1399 = sand.u32 %s140, 1
        %s1400 = smul.addr %s1399, 128
        %s1401 = scalar_lea.vmem [#allocation5], %s1400
        // Predicated region
        $region45: #{tpu_custom_call.1} parent=39 // pred_check
          %p1402 = pneg %p150
        $region46: #{tpu_custom_call.1} parent=39 // pred_check_branch
          %1404 = sbr.rel (%p1402) target = $region48
        $region47: #{tpu_custom_call.1} parent=39 // pred_region
          %s1405 = smul.u32 2, %s22
          %s1407 = ssub.s32 2048, 2048
          %1408 = vsyncadd %s1398, %s1407
          %s1409 = smul.addr %s1405, 8
          %s1410 = smul.addr %s1409, 128
          %s1411 = scalar_lea.hbm %s5, %s1410
          %s1412 = sshll.u32 %s1401, 4
          %s1413 = int_to_ptr.vmem [resolvable:$true] %s1412
          %1418 = dma.vmem_to_hbm [thread:$0]  %s1413, 2048, %s1411, %s1398, 256, 256, 16
        $region48: #{tpu_custom_call.1} parent=39 // pred_fallthru
          _
      $region40: #{tpu_custom_call.1} parent=5 // pred_fallthru
        _
      %p1419 = scmp.le.s32.totalorder 2, %s17
      // Predicated region
      $region49: #{tpu_custom_call.1} parent=5 // pred_check
        %p1420 = pneg %p1419
      $region50: #{tpu_custom_call.1} parent=5 // pred_check_branch
        %1422 = sbr.rel (%p1420) target = $region52
      $region51: #{tpu_custom_call.1} parent=5 // pred_region
        %s1423 = ssub.s32 %s17, 2
        // Predicated region
        $region53: #{tpu_custom_call.1} parent=51 // pred_check
          %p1424 = pneg %p156
        $region54: #{tpu_custom_call.1} parent=51 // pred_check_branch
          %1426 = sbr.rel (%p1424) target = $region56
        $region55: #{tpu_custom_call.1} parent=51 // pred_region
          %s1427 = sand.u32 %s141, 1
          %s1428 = scalar_lea.sflag [#allocation4], %s1427
          %s1429 = sand.u32 %s141, 1
          %s1430 = smul.addr %s1429, 128
          %s1431 = scalar_lea.vmem [#allocation5], %s1430
          %1432 = dma.done %s1428, 2048
        $region56: #{tpu_custom_call.1} parent=51 // pred_fallthru
          _
      $region52: #{tpu_custom_call.1} parent=5 // pred_fallthru
        _
    $region6: #{tpu_custom_call.1} parent=1 // loop_footer
      %s21 = sadd.s32 1, %s17
    $region7: #{tpu_custom_call.1} parent=1 // loop_footer_branch
      %16 = sbr.rel target = $region3
    $region8: #{tpu_custom_call.1} parent=1 // loop_exit
      _
    %1433 = vsyncpa [#allocation3], 1
    %s1434 = scalar_lea.sflag [#allocation3], 1
    %1435 = vsyncpa %s1434, 1
    %1436 = vsyncpa [#allocation4], 1
    %s1437 = scalar_lea.sflag [#allocation4], 1
    %1438 = vsyncpa %s1437, 1

</llo_original>
